<compile_context>
chip_gen: v7x
topology: tpu7x:2x2x1
jax: 0.10.0
libtpu: 0.0.40
codegen_flags: <defaults>
</compile_context>

<pallas_src>
import functools

import jax
import jax.numpy as jnp
from jax.experimental import pallas as pl
from jax.experimental.pallas import tpu as pltpu

INPUT_SIZE = 784
HIDDEN_SIZE = 500
NUM_CLASSES = 10

# Padded (TPU-friendly) dims used inside the kernel.
HIDDEN_PAD = 512   # 4 x 128
CLASSES_PAD = 128  # 1 x 128 -> unmasked lane-dense stores


def _round_up(x, m):
    return ((x + m - 1) // m) * m


def _pad_to(a, shape):
    pads = [(0, t - s) for s, t in zip(a.shape, shape)]
    return jnp.pad(a, pads)


def mlp_kernel(x_ref, w1_ref, b1_ref, w2_ref, b2_ref, o_ref):
    # fc1: (TB, 784) @ (784, 512) -> f32 accumulate; bias + ReLU in f32.
    h = jnp.dot(x_ref[...], w1_ref[...], preferred_element_type=jnp.float32)
    h = jnp.maximum(h + b1_ref[...], 0.0)
    # fc2: (TB, 512) @ (512, 128) -> f32 accumulate; bias in f32.
    out = jnp.dot(h.astype(w2_ref.dtype), w2_ref[...],
                  preferred_element_type=jnp.float32)
    o_ref[...] = (out + b2_ref[...]).astype(o_ref.dtype)


@functools.partial(jax.jit, static_argnames=("block_batch", "compute_dtype"))
def neural_net_forward(x, w1, b1, w2, b2, *, block_batch=512,
                       compute_dtype=jnp.bfloat16):
    """Fused fc1 -> relu -> fc2.

    x : (batch, 784) float32
    w1: (784, 500), b1: (1, 500), w2: (500, 10), b2: (1, 10)   (pre-transposed)
    Returns (batch, 10) in x.dtype.
    """
    batch = x.shape[0]
    out_dtype = x.dtype

    # Batch tile: multiple of 16 (bf16 sublane packing), capped at block_batch.
    tb = min(block_batch, _round_up(batch, 16))
    grid = pl.cdiv(batch, tb)
    padded_batch = grid * tb

    # Zero-pad to TPU-aligned shapes (zeros are exact no-ops for this math).
    x_p = _pad_to(x, (padded_batch, INPUT_SIZE)).astype(compute_dtype)
    w1_p = _pad_to(w1, (INPUT_SIZE, HIDDEN_PAD)).astype(compute_dtype)
    b1_p = _pad_to(b1, (1, HIDDEN_PAD)).astype(jnp.float32)
    w2_p = _pad_to(w2, (HIDDEN_PAD, CLASSES_PAD)).astype(compute_dtype)
    b2_p = _pad_to(b2, (1, CLASSES_PAD)).astype(jnp.float32)

    out_shape = jax.ShapeDtypeStruct((padded_batch, CLASSES_PAD), out_dtype)

    flops = 2 * padded_batch * (INPUT_SIZE * HIDDEN_PAD + HIDDEN_PAD * CLASSES_PAD)
    bytes_accessed = (
        x_p.size * x_p.dtype.itemsize
        + w1_p.size * w1_p.dtype.itemsize
        + b1_p.size * b1_p.dtype.itemsize
        + w2_p.size * w2_p.dtype.itemsize
        + b2_p.size * b2_p.dtype.itemsize
        + padded_batch * CLASSES_PAD * jnp.dtype(out_dtype).itemsize
    )

    out = pl.pallas_call(
        mlp_kernel,
        out_shape=out_shape,
        grid=(grid,),
        in_specs=[
            # x tiles stream along the batch grid axis.
            pl.BlockSpec((tb, INPUT_SIZE), lambda i: (i, 0)),
            # Weights / biases: constant index_map -> DMA'd once, VMEM-resident.
            pl.BlockSpec((INPUT_SIZE, HIDDEN_PAD), lambda i: (0, 0)),
            pl.BlockSpec((1, HIDDEN_PAD), lambda i: (0, 0)),
            pl.BlockSpec((HIDDEN_PAD, CLASSES_PAD), lambda i: (0, 0)),
            pl.BlockSpec((1, CLASSES_PAD), lambda i: (0, 0)),
        ],
        out_specs=pl.BlockSpec((tb, CLASSES_PAD), lambda i: (i, 0)),
        compiler_params=pltpu.CompilerParams(
            dimension_semantics=("parallel",),  # v7x: shard batch over 2 TCs
        ),
        cost_estimate=pl.CostEstimate(
            flops=flops, transcendentals=0, bytes_accessed=bytes_accessed),
    )(x_p, w1_p, b1_p, w2_p, b2_p)

    # Strip batch padding and the padded class lanes.
    return out[:batch, :NUM_CLASSES]


def init_params(key, dtype=jnp.float32):
    """Deterministic init mimicking PyTorch nn.Linear default
    (U[-1/sqrt(fan_in), 1/sqrt(fan_in)]). Weights stored pre-transposed (in, out)."""
    k1, k2, k3, k4 = jax.random.split(key, 4)
    bound1 = 1.0 / (INPUT_SIZE ** 0.5)
    bound2 = 1.0 / (HIDDEN_SIZE ** 0.5)
    w1 = jax.random.uniform(k1, (INPUT_SIZE, HIDDEN_SIZE), dtype, -bound1, bound1)
    b1 = jax.random.uniform(k2, (1, HIDDEN_SIZE), dtype, -bound1, bound1)
    w2 = jax.random.uniform(k3, (HIDDEN_SIZE, NUM_CLASSES), dtype, -bound2, bound2)
    b2 = jax.random.uniform(k4, (1, NUM_CLASSES), dtype, -bound2, bound2)
    return w1, b1, w2, b2


if __name__ == "__main__":
    key = jax.random.PRNGKey(0)
    kx, kp = jax.random.split(key)

    batch = 16  # small batch of flattened 28x28 MNIST-like images
    x = jax.random.normal(kx, (batch, INPUT_SIZE), jnp.float32)
    w1, b1, w2, b2 = init_params(kp)

    out = neural_net_forward(x, w1, b1, w2, b2)
    out = jax.block_until_ready(out)

    # Reference in plain JAX mirroring the kernel's bf16-compute / f32-accumulate
    # math (same forward semantics as the PyTorch module).
    xb = x.astype(jnp.bfloat16)
    w1b = w1.astype(jnp.bfloat16)
    w2b = w2.astype(jnp.bfloat16)
    h = jnp.maximum(
        jnp.dot(xb, w1b, preferred_element_type=jnp.float32) + b1, 0.0)
    ref = jnp.dot(h.astype(jnp.bfloat16), w2b,
                  preferred_element_type=jnp.float32) + b2

    assert out.shape == (batch, NUM_CLASSES), out.shape
    assert jnp.allclose(out, ref, atol=1e-2, rtol=1e-2), "mismatch vs reference"

    print("KERNEL_OK")
</pallas_src>

<mosaic_0001>
module attributes {stable_mosaic.version = 11 : i64} {
  func.func @mlp_kernel(%arg0: i32, %arg1: memref<16x784xbf16, #tpu.memory_space<vmem>>, %arg2: memref<784x512xbf16, #tpu.memory_space<vmem>>, %arg3: memref<1x512xf32, #tpu.memory_space<vmem>>, %arg4: memref<512x128xbf16, #tpu.memory_space<vmem>>, %arg5: memref<1x128xf32, #tpu.memory_space<vmem>>, %arg6: memref<16x128xf32, #tpu.memory_space<vmem>>) attributes {dimension_semantics = [#tpu.dimension_semantics<parallel>], iteration_bounds = array<i64: 1>, scalar_prefetch = 0 : i64, scratch_operands = 0 : i64, tpu.core_type = #tpu.core_type<tc>, window_params = [{transform_indices = @transform_0, window_bounds = array<i64: 16, 784>}, {pipeline_mode = #tpu.pipeline_mode<synchronous>, transform_indices = @transform_1, window_bounds = array<i64: 784, 512>}, {pipeline_mode = #tpu.pipeline_mode<synchronous>, transform_indices = @transform_2, window_bounds = array<i64: 1, 512>}, {pipeline_mode = #tpu.pipeline_mode<synchronous>, transform_indices = @transform_3, window_bounds = array<i64: 512, 128>}, {pipeline_mode = #tpu.pipeline_mode<synchronous>, transform_indices = @transform_4, window_bounds = array<i64: 1, 128>}, {transform_indices = @transform_5, window_bounds = array<i64: 16, 128>}]} {
    %c0 = arith.constant 0 : index
    %c0_0 = arith.constant 0 : index
    %0 = vector.load %arg1[%c0, %c0_0] : memref<16x784xbf16, #tpu.memory_space<vmem>>, vector<16x784xbf16>
    %c0_1 = arith.constant 0 : index
    %c0_2 = arith.constant 0 : index
    %1 = vector.load %arg2[%c0_1, %c0_2] : memref<784x512xbf16, #tpu.memory_space<vmem>>, vector<784x512xbf16>
    %cst = arith.constant dense<0.000000e+00> : vector<16x512xf32>
    %2 = tpu.matmul %0, %1, %cst {dimension_numbers = #tpu.dot_dimension_numbers<[1], [0], [0], [1], [0, 0, 1, 1], [], []>} : vector<16x784xbf16>, vector<784x512xbf16>, vector<16x512xf32> -> vector<16x512xf32>
    %c0_3 = arith.constant 0 : index
    %c0_4 = arith.constant 0 : index
    %3 = vector.load %arg3[%c0_3, %c0_4] : memref<1x512xf32, #tpu.memory_space<vmem>>, vector<1x512xf32>
    %4 = vector.broadcast %3 : vector<1x512xf32> to vector<16x512xf32>
    %5 = arith.addf %2, %4 : vector<16x512xf32>
    %cst_5 = arith.constant 0.000000e+00 : f32
    %6 = vector.broadcast %cst_5 : f32 to vector<16x512xf32>
    %7 = arith.maximumf %5, %6 : vector<16x512xf32>
    %8 = arith.truncf %7 : vector<16x512xf32> to vector<16x512xbf16>
    %c0_6 = arith.constant 0 : index
    %c0_7 = arith.constant 0 : index
    %9 = vector.load %arg4[%c0_6, %c0_7] : memref<512x128xbf16, #tpu.memory_space<vmem>>, vector<512x128xbf16>
    %cst_8 = arith.constant dense<0.000000e+00> : vector<16x128xf32>
    %10 = tpu.matmul %8, %9, %cst_8 {dimension_numbers = #tpu.dot_dimension_numbers<[1], [0], [0], [1], [0, 0, 1, 1], [], []>} : vector<16x512xbf16>, vector<512x128xbf16>, vector<16x128xf32> -> vector<16x128xf32>
    %c0_9 = arith.constant 0 : index
    %c0_10 = arith.constant 0 : index
    %11 = vector.load %arg5[%c0_9, %c0_10] : memref<1x128xf32, #tpu.memory_space<vmem>>, vector<1x128xf32>
    %12 = vector.broadcast %11 : vector<1x128xf32> to vector<16x128xf32>
    %13 = arith.addf %10, %12 : vector<16x128xf32>
    %c0_11 = arith.constant 0 : index
    %c0_12 = arith.constant 0 : index
    %14 = vector.load %arg6[%c0_11, %c0_12] : memref<16x128xf32, #tpu.memory_space<vmem>>, vector<16x128xf32>
    tpu.vector_store %arg6[%c0_11, %c0_12], %13 {strides = array<i32>} : memref<16x128xf32, #tpu.memory_space<vmem>>, vector<16x128xf32>,
    return
  }
  func.func @transform_0(%arg0: i32) -> (i32, i32) {
    %c0_i32 = arith.constant 0 : i32
    %c0_i32_0 = arith.constant 0 : i32
    return %arg0, %c0_i32 : i32, i32
  }
  func.func @transform_1(%arg0: i32) -> (i32, i32) {
    %c0_i32 = arith.constant 0 : i32
    %c0_i32_0 = arith.constant 0 : i32
    %c0_i32_1 = arith.constant 0 : i32
    return %c0_i32, %c0_i32_0 : i32, i32
  }
  func.func @transform_2(%arg0: i32) -> (i32, i32) {
    %c0_i32 = arith.constant 0 : i32
    %c0_i32_0 = arith.constant 0 : i32
    %c0_i32_1 = arith.constant 0 : i32
    return %c0_i32, %c0_i32_0 : i32, i32
  }
  func.func @transform_3(%arg0: i32) -> (i32, i32) {
    %c0_i32 = arith.constant 0 : i32
    %c0_i32_0 = arith.constant 0 : i32
    %c0_i32_1 = arith.constant 0 : i32
    return %c0_i32, %c0_i32_0 : i32, i32
  }
  func.func @transform_4(%arg0: i32) -> (i32, i32) {
    %c0_i32 = arith.constant 0 : i32
    %c0_i32_0 = arith.constant 0 : i32
    %c0_i32_1 = arith.constant 0 : i32
    return %c0_i32, %c0_i32_0 : i32, i32
  }
  func.func @transform_5(%arg0: i32) -> (i32, i32) {
    %c0_i32 = arith.constant 0 : i32
    %c0_i32_0 = arith.constant 0 : i32
    return %arg0, %c0_i32 : i32, i32
  }
}

</mosaic_0001>

<llo_original>
// kernel: neural_net_forward.1
$region0: #{neural_net_forward.1}
  #allocation0 [shape = 'u32[]', space=smem, size = 0x4, offset = 0x4, fixed_abs, tag = 'smem constant byte address 0x4 - core index']
  #allocation1 [shape = 'u32[144,128]{1,0:T(1,128)}', space=vmem, size = 0x12000, scoped, tag = 'internal scratch']
  %s0 = inlined_call_operand.vmem [shape: bf16[16,784], index: 0, kind: input, shape index: {}]
  %s1 = inlined_call_operand.vmem [shape: bf16[784,512], index: 1, kind: input, shape index: {}]
  %s2 = inlined_call_operand.vmem [shape: f32[1,512], index: 2, kind: input, shape index: {}]
  %s3 = inlined_call_operand.vmem [shape: bf16[512,128], index: 3, kind: input, shape index: {}]
  %s4 = inlined_call_operand.vmem [shape: f32[1,128], index: 4, kind: input, shape index: {}]
  %s5 = inlined_call_operand.hbm [shape: f32[16,128], index: 5, kind: output, shape index: {}]
  %s6 = sld [smem:[#allocation0]]
  $region30: #{neural_net_forward.1} parent=0
    _
  %s8 = ssub.s32 1, %s6
  %s9 = scalar_select 0, %s8, %s6
  $region1: #{neural_net_forward.1} parent=0
    #allocation2 [shape = 'u8[8192]{0}', space=vmem, size = 0x2000, scoped, tag = 'output window, operand 0, single buffered']
    #allocation3 [shape = 's32[1]{0}', space=sflag, size = 0x4, scoped, tag = 'scoped memory for neural_net_forward.1']
    %10 = vsyncpa [#allocation3], 0
    // Predicated region
    $region2: #{neural_net_forward.1} parent=1 // pred_check
      _
    $region3: #{neural_net_forward.1} parent=1 // pred_check_branch
      %12 = sbr.rel (0) target = $region5
    $region4: #{neural_net_forward.1} parent=1 // pred_region
      _
    $region5: #{neural_net_forward.1} parent=1 // pred_fallthru
      _
    // Predicated region
    $region6: #{neural_net_forward.1} parent=1 // pred_check
      _
    $region7: #{neural_net_forward.1} parent=1 // pred_check_branch
      %14 = sbr.rel (0) target = $region9
    $region8: #{neural_net_forward.1} parent=1 // pred_region
      _
    $region9: #{neural_net_forward.1} parent=1 // pred_fallthru
      _
    // Predicated region
    $region10: #{neural_net_forward.1} parent=1 // pred_check
      _
    $region11: #{neural_net_forward.1} parent=1 // pred_check_branch
      %16 = sbr.rel (0) target = $region13
    $region12: #{neural_net_forward.1} parent=1 // pred_region
      _
    $region13: #{neural_net_forward.1} parent=1 // pred_fallthru
      _
    // Predicated region
    $region14: #{neural_net_forward.1} parent=1 // pred_check
      _
    $region15: #{neural_net_forward.1} parent=1 // pred_check_branch
      %18 = sbr.rel (0) target = $region17
    $region16: #{neural_net_forward.1} parent=1 // pred_region
      _
    $region17: #{neural_net_forward.1} parent=1 // pred_fallthru
      _
    // Predicated region
    $region18: #{neural_net_forward.1} parent=1 // pred_check
      _
    $region19: #{neural_net_forward.1} parent=1 // pred_check_branch
      %20 = sbr.rel (0) target = $region21
    $region20: #{neural_net_forward.1} parent=1 // pred_region
      _
    $region21: #{neural_net_forward.1} parent=1 // pred_fallthru
      _
    %v22 = vld [vmem:[%s0] sm:$0xff]
    %v23 = vld [vmem:[%s0 + $0x8] sm:$0xff]
    %v24 = vld [vmem:[%s0 + $0x10] sm:$0xff]
    %v25 = vld [vmem:[%s0 + $0x18] sm:$0xf]
    %v26 = vld [vmem:[%s0 + $0x1c] sm:$0xff]
    %v27 = vld [vmem:[%s0 + $0x24] sm:$0xff]
    %v28 = vld [vmem:[%s0 + $0x2c] sm:$0xff]
    %v29 = vld [vmem:[%s0 + $0x34] sm:$0xf]
    %v30 = vld [vmem:[%s1] sm:$0xff]
    %v31 = vld [vmem:[%s1 + $0x8] sm:$0xff]
    %v32 = vld [vmem:[%s1 + $0x10] sm:$0xff]
    %v33 = vld [vmem:[%s1 + $0x18] sm:$0xff]
    %v34 = vld [vmem:[%s1 + $0x20] sm:$0xff]
    %v35 = vld [vmem:[%s1 + $0x28] sm:$0xff]
    %v36 = vld [vmem:[%s1 + $0x30] sm:$0xff]
    %v37 = vld [vmem:[%s1 + $0x38] sm:$0xff]
    %v38 = vld [vmem:[%s1 + $0x40] sm:$0xff]
    %v39 = vld [vmem:[%s1 + $0x48] sm:$0xff]
    %v40 = vld [vmem:[%s1 + $0x50] sm:$0xff]
    %v41 = vld [vmem:[%s1 + $0x58] sm:$0xff]
    %v42 = vld [vmem:[%s1 + $0x60] sm:$0xff]
    %v43 = vld [vmem:[%s1 + $0x68] sm:$0xff]
    %v44 = vld [vmem:[%s1 + $0x70] sm:$0xff]
    %v45 = vld [vmem:[%s1 + $0x78] sm:$0xff]
    %v46 = vld [vmem:[%s1 + $0x80] sm:$0xff]
    %v47 = vld [vmem:[%s1 + $0x88] sm:$0xff]
    %v48 = vld [vmem:[%s1 + $0x90] sm:$0xff]
    %v49 = vld [vmem:[%s1 + $0x98] sm:$0xff]
    %v50 = vld [vmem:[%s1 + $0xa0] sm:$0xff]
    %v51 = vld [vmem:[%s1 + $0xa8] sm:$0xff]
    %v52 = vld [vmem:[%s1 + $0xb0] sm:$0xff]
    %v53 = vld [vmem:[%s1 + $0xb8] sm:$0xff]
    %v54 = vld [vmem:[%s1 + $0xc0] sm:$0xff]
    %v55 = vld [vmem:[%s1 + $0xc8] sm:$0xff]
    %v56 = vld [vmem:[%s1 + $0xd0] sm:$0xff]
    %v57 = vld [vmem:[%s1 + $0xd8] sm:$0xff]
    %v58 = vld [vmem:[%s1 + $0xe0] sm:$0xff]
    %v59 = vld [vmem:[%s1 + $0xe8] sm:$0xff]
    %v60 = vld [vmem:[%s1 + $0xf0] sm:$0xff]
    %v61 = vld [vmem:[%s1 + $0xf8] sm:$0xff]
    %v62 = vld [vmem:[%s1 + $0x100] sm:$0xff]
    %v63 = vld [vmem:[%s1 + $0x108] sm:$0xff]
    %v64 = vld [vmem:[%s1 + $0x110] sm:$0xff]
    %v65 = vld [vmem:[%s1 + $0x118] sm:$0xff]
    %v66 = vld [vmem:[%s1 + $0x120] sm:$0xff]
    %v67 = vld [vmem:[%s1 + $0x128] sm:$0xff]
    %v68 = vld [vmem:[%s1 + $0x130] sm:$0xff]
    %v69 = vld [vmem:[%s1 + $0x138] sm:$0xff]
    %v70 = vld [vmem:[%s1 + $0x140] sm:$0xff]
    %v71 = vld [vmem:[%s1 + $0x148] sm:$0xff]
    %v72 = vld [vmem:[%s1 + $0x150] sm:$0xff]
    %v73 = vld [vmem:[%s1 + $0x158] sm:$0xff]
    %v74 = vld [vmem:[%s1 + $0x160] sm:$0xff]
    %v75 = vld [vmem:[%s1 + $0x168] sm:$0xff]
    %v76 = vld [vmem:[%s1 + $0x170] sm:$0xff]
    %v77 = vld [vmem:[%s1 + $0x178] sm:$0xff]
    %v78 = vld [vmem:[%s1 + $0x180] sm:$0xff]
    %v79 = vld [vmem:[%s1 + $0x188] sm:$0xff]
    %v80 = vld [vmem:[%s1 + $0x190] sm:$0xff]
    %v81 = vld [vmem:[%s1 + $0x198] sm:$0xff]
    %v82 = vld [vmem:[%s1 + $0x1a0] sm:$0xff]
    %v83 = vld [vmem:[%s1 + $0x1a8] sm:$0xff]
    %v84 = vld [vmem:[%s1 + $0x1b0] sm:$0xff]
    %v85 = vld [vmem:[%s1 + $0x1b8] sm:$0xff]
    %v86 = vld [vmem:[%s1 + $0x1c0] sm:$0xff]
    %v87 = vld [vmem:[%s1 + $0x1c8] sm:$0xff]
    %v88 = vld [vmem:[%s1 + $0x1d0] sm:$0xff]
    %v89 = vld [vmem:[%s1 + $0x1d8] sm:$0xff]
    %v90 = vld [vmem:[%s1 + $0x1e0] sm:$0xff]
    %v91 = vld [vmem:[%s1 + $0x1e8] sm:$0xff]
    %v92 = vld [vmem:[%s1 + $0x1f0] sm:$0xff]
    %v93 = vld [vmem:[%s1 + $0x1f8] sm:$0xff]
    %v94 = vld [vmem:[%s1 + $0x200] sm:$0xff]
    %v95 = vld [vmem:[%s1 + $0x208] sm:$0xff]
    %v96 = vld [vmem:[%s1 + $0x210] sm:$0xff]
    %v97 = vld [vmem:[%s1 + $0x218] sm:$0xff]
    %v98 = vld [vmem:[%s1 + $0x220] sm:$0xff]
    %v99 = vld [vmem:[%s1 + $0x228] sm:$0xff]
    %v100 = vld [vmem:[%s1 + $0x230] sm:$0xff]
    %v101 = vld [vmem:[%s1 + $0x238] sm:$0xff]
    %v102 = vld [vmem:[%s1 + $0x240] sm:$0xff]
    %v103 = vld [vmem:[%s1 + $0x248] sm:$0xff]
    %v104 = vld [vmem:[%s1 + $0x250] sm:$0xff]
    %v105 = vld [vmem:[%s1 + $0x258] sm:$0xff]
    %v106 = vld [vmem:[%s1 + $0x260] sm:$0xff]
    %v107 = vld [vmem:[%s1 + $0x268] sm:$0xff]
    %v108 = vld [vmem:[%s1 + $0x270] sm:$0xff]
    %v109 = vld [vmem:[%s1 + $0x278] sm:$0xff]
    %v110 = vld [vmem:[%s1 + $0x280] sm:$0xff]
    %v111 = vld [vmem:[%s1 + $0x288] sm:$0xff]
    %v112 = vld [vmem:[%s1 + $0x290] sm:$0xff]
    %v113 = vld [vmem:[%s1 + $0x298] sm:$0xff]
    %v114 = vld [vmem:[%s1 + $0x2a0] sm:$0xff]
    %v115 = vld [vmem:[%s1 + $0x2a8] sm:$0xff]
    %v116 = vld [vmem:[%s1 + $0x2b0] sm:$0xff]
    %v117 = vld [vmem:[%s1 + $0x2b8] sm:$0xff]
    %v118 = vld [vmem:[%s1 + $0x2c0] sm:$0xff]
    %v119 = vld [vmem:[%s1 + $0x2c8] sm:$0xff]
    %v120 = vld [vmem:[%s1 + $0x2d0] sm:$0xff]
    %v121 = vld [vmem:[%s1 + $0x2d8] sm:$0xff]
    %v122 = vld [vmem:[%s1 + $0x2e0] sm:$0xff]
    %v123 = vld [vmem:[%s1 + $0x2e8] sm:$0xff]
    %v124 = vld [vmem:[%s1 + $0x2f0] sm:$0xff]
    %v125 = vld [vmem:[%s1 + $0x2f8] sm:$0xff]
    %v126 = vld [vmem:[%s1 + $0x300] sm:$0xff]
    %v127 = vld [vmem:[%s1 + $0x308] sm:$0xff]
    %v128 = vld [vmem:[%s1 + $0x310] sm:$0xff]
    %v129 = vld [vmem:[%s1 + $0x318] sm:$0xff]
    %v130 = vld [vmem:[%s1 + $0x320] sm:$0xff]
    %v131 = vld [vmem:[%s1 + $0x328] sm:$0xff]
    %v132 = vld [vmem:[%s1 + $0x330] sm:$0xff]
    %v133 = vld [vmem:[%s1 + $0x338] sm:$0xff]
    %v134 = vld [vmem:[%s1 + $0x340] sm:$0xff]
    %v135 = vld [vmem:[%s1 + $0x348] sm:$0xff]
    %v136 = vld [vmem:[%s1 + $0x350] sm:$0xff]
    %v137 = vld [vmem:[%s1 + $0x358] sm:$0xff]
    %v138 = vld [vmem:[%s1 + $0x360] sm:$0xff]
    %v139 = vld [vmem:[%s1 + $0x368] sm:$0xff]
    %v140 = vld [vmem:[%s1 + $0x370] sm:$0xff]
    %v141 = vld [vmem:[%s1 + $0x378] sm:$0xff]
    %v142 = vld [vmem:[%s1 + $0x380] sm:$0xff]
    %v143 = vld [vmem:[%s1 + $0x388] sm:$0xff]
    %v144 = vld [vmem:[%s1 + $0x390] sm:$0xff]
    %v145 = vld [vmem:[%s1 + $0x398] sm:$0xff]
    %v146 = vld [vmem:[%s1 + $0x3a0] sm:$0xff]
    %v147 = vld [vmem:[%s1 + $0x3a8] sm:$0xff]
    %v148 = vld [vmem:[%s1 + $0x3b0] sm:$0xff]
    %v149 = vld [vmem:[%s1 + $0x3b8] sm:$0xff]
    %v150 = vld [vmem:[%s1 + $0x3c0] sm:$0xff]
    %v151 = vld [vmem:[%s1 + $0x3c8] sm:$0xff]
    %v152 = vld [vmem:[%s1 + $0x3d0] sm:$0xff]
    %v153 = vld [vmem:[%s1 + $0x3d8] sm:$0xff]
    %v154 = vld [vmem:[%s1 + $0x3e0] sm:$0xff]
    %v155 = vld [vmem:[%s1 + $0x3e8] sm:$0xff]
    %v156 = vld [vmem:[%s1 + $0x3f0] sm:$0xff]
    %v157 = vld [vmem:[%s1 + $0x3f8] sm:$0xff]
    %v158 = vld [vmem:[%s1 + $0x400] sm:$0xff]
    %v159 = vld [vmem:[%s1 + $0x408] sm:$0xff]
    %v160 = vld [vmem:[%s1 + $0x410] sm:$0xff]
    %v161 = vld [vmem:[%s1 + $0x418] sm:$0xff]
    %v162 = vld [vmem:[%s1 + $0x420] sm:$0xff]
    %v163 = vld [vmem:[%s1 + $0x428] sm:$0xff]
    %v164 = vld [vmem:[%s1 + $0x430] sm:$0xff]
    %v165 = vld [vmem:[%s1 + $0x438] sm:$0xff]
    %v166 = vld [vmem:[%s1 + $0x440] sm:$0xff]
    %v167 = vld [vmem:[%s1 + $0x448] sm:$0xff]
    %v168 = vld [vmem:[%s1 + $0x450] sm:$0xff]
    %v169 = vld [vmem:[%s1 + $0x458] sm:$0xff]
    %v170 = vld [vmem:[%s1 + $0x460] sm:$0xff]
    %v171 = vld [vmem:[%s1 + $0x468] sm:$0xff]
    %v172 = vld [vmem:[%s1 + $0x470] sm:$0xff]
    %v173 = vld [vmem:[%s1 + $0x478] sm:$0xff]
    %v174 = vld [vmem:[%s1 + $0x480] sm:$0xff]
    %v175 = vld [vmem:[%s1 + $0x488] sm:$0xff]
    %v176 = vld [vmem:[%s1 + $0x490] sm:$0xff]
    %v177 = vld [vmem:[%s1 + $0x498] sm:$0xff]
    %v178 = vld [vmem:[%s1 + $0x4a0] sm:$0xff]
    %v179 = vld [vmem:[%s1 + $0x4a8] sm:$0xff]
    %v180 = vld [vmem:[%s1 + $0x4b0] sm:$0xff]
    %v181 = vld [vmem:[%s1 + $0x4b8] sm:$0xff]
    %v182 = vld [vmem:[%s1 + $0x4c0] sm:$0xff]
    %v183 = vld [vmem:[%s1 + $0x4c8] sm:$0xff]
    %v184 = vld [vmem:[%s1 + $0x4d0] sm:$0xff]
    %v185 = vld [vmem:[%s1 + $0x4d8] sm:$0xff]
    %v186 = vld [vmem:[%s1 + $0x4e0] sm:$0xff]
    %v187 = vld [vmem:[%s1 + $0x4e8] sm:$0xff]
    %v188 = vld [vmem:[%s1 + $0x4f0] sm:$0xff]
    %v189 = vld [vmem:[%s1 + $0x4f8] sm:$0xff]
    %v190 = vld [vmem:[%s1 + $0x500] sm:$0xff]
    %v191 = vld [vmem:[%s1 + $0x508] sm:$0xff]
    %v192 = vld [vmem:[%s1 + $0x510] sm:$0xff]
    %v193 = vld [vmem:[%s1 + $0x518] sm:$0xff]
    %v194 = vld [vmem:[%s1 + $0x520] sm:$0xff]
    %v195 = vld [vmem:[%s1 + $0x528] sm:$0xff]
    %v196 = vld [vmem:[%s1 + $0x530] sm:$0xff]
    %v197 = vld [vmem:[%s1 + $0x538] sm:$0xff]
    %v198 = vld [vmem:[%s1 + $0x540] sm:$0xff]
    %v199 = vld [vmem:[%s1 + $0x548] sm:$0xff]
    %v200 = vld [vmem:[%s1 + $0x550] sm:$0xff]
    %v201 = vld [vmem:[%s1 + $0x558] sm:$0xff]
    %v202 = vld [vmem:[%s1 + $0x560] sm:$0xff]
    %v203 = vld [vmem:[%s1 + $0x568] sm:$0xff]
    %v204 = vld [vmem:[%s1 + $0x570] sm:$0xff]
    %v205 = vld [vmem:[%s1 + $0x578] sm:$0xff]
    %v206 = vld [vmem:[%s1 + $0x580] sm:$0xff]
    %v207 = vld [vmem:[%s1 + $0x588] sm:$0xff]
    %v208 = vld [vmem:[%s1 + $0x590] sm:$0xff]
    %v209 = vld [vmem:[%s1 + $0x598] sm:$0xff]
    %v210 = vld [vmem:[%s1 + $0x5a0] sm:$0xff]
    %v211 = vld [vmem:[%s1 + $0x5a8] sm:$0xff]
    %v212 = vld [vmem:[%s1 + $0x5b0] sm:$0xff]
    %v213 = vld [vmem:[%s1 + $0x5b8] sm:$0xff]
    %v214 = vld [vmem:[%s1 + $0x5c0] sm:$0xff]
    %v215 = vld [vmem:[%s1 + $0x5c8] sm:$0xff]
    %v216 = vld [vmem:[%s1 + $0x5d0] sm:$0xff]
    %v217 = vld [vmem:[%s1 + $0x5d8] sm:$0xff]
    %v218 = vld [vmem:[%s1 + $0x5e0] sm:$0xff]
    %v219 = vld [vmem:[%s1 + $0x5e8] sm:$0xff]
    %v220 = vld [vmem:[%s1 + $0x5f0] sm:$0xff]
    %v221 = vld [vmem:[%s1 + $0x5f8] sm:$0xff]
    %v222 = vld [vmem:[%s1 + $0x600] sm:$0xff]
    %v223 = vld [vmem:[%s1 + $0x608] sm:$0xff]
    %v224 = vld [vmem:[%s1 + $0x610] sm:$0xff]
    %v225 = vld [vmem:[%s1 + $0x618] sm:$0xff]
    %v226 = vld [vmem:[%s2] sm:$0xf]
    %v228 = vlaneseq
    %v229 = vshrl.u32 %v228, 7
    %v230 = vsub.s32 0, %v229
    %v231 = vrot.slane %v226, %v230
    %v232 = vlaneseq
    %v233 = vshrl.u32 %v232, 7
    %v234 = vsub.s32 1, %v233
    %v235 = vrot.slane %v226, %v234
    %v236 = vlaneseq
    %v237 = vshrl.u32 %v236, 7
    %v238 = vsub.s32 2, %v237
    %v239 = vrot.slane %v226, %v238
    %v240 = vlaneseq
    %v241 = vshrl.u32 %v240, 7
    %v242 = vsub.s32 3, %v241
    %v243 = vrot.slane %v226, %v242
    %v256 = vunpack.c.l.b16 %v22
    %v257 = vunpack.c.h.b16 %v22
    %v258 = vunpack.c.l.b16 %v23
    %v259 = vunpack.c.h.b16 %v23
    %v260 = vunpack.c.l.b16 %v24
    %v261 = vunpack.c.h.b16 %v24
    %v262 = vunpack.c.l.b16 %v25
    %v263 = vunpack.c.l.b16 %v26
    %v264 = vunpack.c.h.b16 %v26
    %v265 = vunpack.c.l.b16 %v27
    %v266 = vunpack.c.h.b16 %v27
    %v267 = vunpack.c.l.b16 %v28
    %v268 = vunpack.c.h.b16 %v28
    %v269 = vunpack.c.l.b16 %v29
    %v270 = vpack.c.b16 %v263, %v256
    %v271 = vpack.c.b16 %v264, %v257
    %v272 = vpack.c.b16 %v265, %v258
    %v273 = vpack.c.b16 %v266, %v259
    %v274 = vpack.c.b16 %v267, %v260
    %v275 = vpack.c.b16 %v268, %v261
    %v276 = vpack.c.b16 %v269, %v262
    %v479 = vunpack.c.l.b16 %v30
    %v480 = vunpack.c.h.b16 %v30
    %v481 = vunpack.c.l.b16 %v31
    %v482 = vunpack.c.h.b16 %v31
    %v483 = vunpack.c.l.b16 %v32
    %v484 = vunpack.c.h.b16 %v32
    %v485 = vunpack.c.l.b16 %v33
    %v486 = vunpack.c.h.b16 %v33
    %v487 = vunpack.c.l.b16 %v34
    %v488 = vunpack.c.h.b16 %v34
    %v489 = vunpack.c.l.b16 %v35
    %v490 = vunpack.c.h.b16 %v35
    %v491 = vunpack.c.l.b16 %v36
    %v492 = vunpack.c.h.b16 %v36
    %v493 = vunpack.c.l.b16 %v37
    %v494 = vunpack.c.h.b16 %v37
    %v495 = vunpack.c.l.b16 %v38
    %v496 = vunpack.c.h.b16 %v38
    %v497 = vunpack.c.l.b16 %v39
    %v498 = vunpack.c.h.b16 %v39
    %v499 = vunpack.c.l.b16 %v40
    %v500 = vunpack.c.h.b16 %v40
    %v501 = vunpack.c.l.b16 %v41
    %v502 = vunpack.c.h.b16 %v41
    %v503 = vunpack.c.l.b16 %v42
    %v504 = vunpack.c.h.b16 %v42
    %v505 = vunpack.c.l.b16 %v43
    %v506 = vunpack.c.h.b16 %v43
    %v507 = vunpack.c.l.b16 %v44
    %v508 = vunpack.c.h.b16 %v44
    %v509 = vunpack.c.l.b16 %v45
    %v510 = vunpack.c.h.b16 %v45
    %v511 = vunpack.c.l.b16 %v46
    %v512 = vunpack.c.h.b16 %v46
    %v513 = vunpack.c.l.b16 %v47
    %v514 = vunpack.c.h.b16 %v47
    %v515 = vunpack.c.l.b16 %v48
    %v516 = vunpack.c.h.b16 %v48
    %v517 = vunpack.c.l.b16 %v49
    %v518 = vunpack.c.h.b16 %v49
    %v519 = vunpack.c.l.b16 %v50
    %v520 = vunpack.c.h.b16 %v50
    %v521 = vunpack.c.l.b16 %v51
    %v522 = vunpack.c.h.b16 %v51
    %v523 = vunpack.c.l.b16 %v52
    %v524 = vunpack.c.h.b16 %v52
    %v525 = vunpack.c.l.b16 %v53
    %v526 = vunpack.c.h.b16 %v53
    %v527 = vunpack.c.l.b16 %v54
    %v528 = vunpack.c.h.b16 %v54
    %v529 = vunpack.c.l.b16 %v55
    %v530 = vunpack.c.h.b16 %v55
    %v531 = vunpack.c.l.b16 %v56
    %v532 = vunpack.c.h.b16 %v56
    %v533 = vunpack.c.l.b16 %v57
    %v534 = vunpack.c.h.b16 %v57
    %v535 = vunpack.c.l.b16 %v58
    %v536 = vunpack.c.h.b16 %v58
    %v537 = vunpack.c.l.b16 %v59
    %v538 = vunpack.c.h.b16 %v59
    %v539 = vunpack.c.l.b16 %v60
    %v540 = vunpack.c.h.b16 %v60
    %v541 = vunpack.c.l.b16 %v61
    %v542 = vunpack.c.h.b16 %v61
    %v543 = vunpack.c.l.b16 %v62
    %v544 = vunpack.c.h.b16 %v62
    %v545 = vunpack.c.l.b16 %v63
    %v546 = vunpack.c.h.b16 %v63
    %v547 = vunpack.c.l.b16 %v64
    %v548 = vunpack.c.h.b16 %v64
    %v549 = vunpack.c.l.b16 %v65
    %v550 = vunpack.c.h.b16 %v65
    %v551 = vunpack.c.l.b16 %v66
    %v552 = vunpack.c.h.b16 %v66
    %v553 = vunpack.c.l.b16 %v67
    %v554 = vunpack.c.h.b16 %v67
    %v555 = vunpack.c.l.b16 %v68
    %v556 = vunpack.c.h.b16 %v68
    %v557 = vunpack.c.l.b16 %v69
    %v558 = vunpack.c.h.b16 %v69
    %v559 = vunpack.c.l.b16 %v70
    %v560 = vunpack.c.h.b16 %v70
    %v561 = vunpack.c.l.b16 %v71
    %v562 = vunpack.c.h.b16 %v71
    %v563 = vunpack.c.l.b16 %v72
    %v564 = vunpack.c.h.b16 %v72
    %v565 = vunpack.c.l.b16 %v73
    %v566 = vunpack.c.h.b16 %v73
    %v567 = vunpack.c.l.b16 %v74
    %v568 = vunpack.c.h.b16 %v74
    %v569 = vunpack.c.l.b16 %v75
    %v570 = vunpack.c.h.b16 %v75
    %v571 = vunpack.c.l.b16 %v76
    %v572 = vunpack.c.h.b16 %v76
    %v573 = vunpack.c.l.b16 %v77
    %v574 = vunpack.c.h.b16 %v77
    %v575 = vunpack.c.l.b16 %v78
    %v576 = vunpack.c.h.b16 %v78
    %v577 = vunpack.c.l.b16 %v79
    %v578 = vunpack.c.h.b16 %v79
    %v579 = vunpack.c.l.b16 %v80
    %v580 = vunpack.c.h.b16 %v80
    %v581 = vunpack.c.l.b16 %v81
    %v582 = vunpack.c.h.b16 %v81
    %v583 = vunpack.c.l.b16 %v82
    %v584 = vunpack.c.h.b16 %v82
    %v585 = vunpack.c.l.b16 %v83
    %v586 = vunpack.c.h.b16 %v83
    %v587 = vunpack.c.l.b16 %v84
    %v588 = vunpack.c.h.b16 %v84
    %v589 = vunpack.c.l.b16 %v85
    %v590 = vunpack.c.h.b16 %v85
    %v591 = vunpack.c.l.b16 %v86
    %v592 = vunpack.c.h.b16 %v86
    %v593 = vunpack.c.l.b16 %v87
    %v594 = vunpack.c.h.b16 %v87
    %v595 = vunpack.c.l.b16 %v88
    %v596 = vunpack.c.h.b16 %v88
    %v597 = vunpack.c.l.b16 %v89
    %v598 = vunpack.c.h.b16 %v89
    %v599 = vunpack.c.l.b16 %v90
    %v600 = vunpack.c.h.b16 %v90
    %v601 = vunpack.c.l.b16 %v91
    %v602 = vunpack.c.h.b16 %v91
    %v603 = vunpack.c.l.b16 %v92
    %v604 = vunpack.c.h.b16 %v92
    %v605 = vunpack.c.l.b16 %v93
    %v606 = vunpack.c.h.b16 %v93
    %v607 = vunpack.c.l.b16 %v94
    %v608 = vunpack.c.h.b16 %v94
    %v609 = vunpack.c.l.b16 %v95
    %v610 = vunpack.c.h.b16 %v95
    %v611 = vunpack.c.l.b16 %v96
    %v612 = vunpack.c.h.b16 %v96
    %v613 = vunpack.c.l.b16 %v97
    %v614 = vunpack.c.h.b16 %v97
    %v615 = vunpack.c.l.b16 %v98
    %v616 = vunpack.c.h.b16 %v98
    %v617 = vunpack.c.l.b16 %v99
    %v618 = vunpack.c.h.b16 %v99
    %v619 = vunpack.c.l.b16 %v100
    %v620 = vunpack.c.h.b16 %v100
    %v621 = vunpack.c.l.b16 %v101
    %v622 = vunpack.c.h.b16 %v101
    %v623 = vunpack.c.l.b16 %v102
    %v624 = vunpack.c.h.b16 %v102
    %v625 = vunpack.c.l.b16 %v103
    %v626 = vunpack.c.h.b16 %v103
    %v627 = vunpack.c.l.b16 %v104
    %v628 = vunpack.c.h.b16 %v104
    %v629 = vunpack.c.l.b16 %v105
    %v630 = vunpack.c.h.b16 %v105
    %v631 = vunpack.c.l.b16 %v106
    %v632 = vunpack.c.h.b16 %v106
    %v633 = vunpack.c.l.b16 %v107
    %v634 = vunpack.c.h.b16 %v107
    %v635 = vunpack.c.l.b16 %v108
    %v636 = vunpack.c.h.b16 %v108
    %v637 = vunpack.c.l.b16 %v109
    %v638 = vunpack.c.h.b16 %v109
    %v639 = vunpack.c.l.b16 %v110
    %v640 = vunpack.c.h.b16 %v110
    %v641 = vunpack.c.l.b16 %v111
    %v642 = vunpack.c.h.b16 %v111
    %v643 = vunpack.c.l.b16 %v112
    %v644 = vunpack.c.h.b16 %v112
    %v645 = vunpack.c.l.b16 %v113
    %v646 = vunpack.c.h.b16 %v113
    %v647 = vunpack.c.l.b16 %v114
    %v648 = vunpack.c.h.b16 %v114
    %v649 = vunpack.c.l.b16 %v115
    %v650 = vunpack.c.h.b16 %v115
    %v651 = vunpack.c.l.b16 %v116
    %v652 = vunpack.c.h.b16 %v116
    %v653 = vunpack.c.l.b16 %v117
    %v654 = vunpack.c.h.b16 %v117
    %v655 = vunpack.c.l.b16 %v118
    %v656 = vunpack.c.h.b16 %v118
    %v657 = vunpack.c.l.b16 %v119
    %v658 = vunpack.c.h.b16 %v119
    %v659 = vunpack.c.l.b16 %v120
    %v660 = vunpack.c.h.b16 %v120
    %v661 = vunpack.c.l.b16 %v121
    %v662 = vunpack.c.h.b16 %v121
    %v663 = vunpack.c.l.b16 %v122
    %v664 = vunpack.c.h.b16 %v122
    %v665 = vunpack.c.l.b16 %v123
    %v666 = vunpack.c.h.b16 %v123
    %v667 = vunpack.c.l.b16 %v124
    %v668 = vunpack.c.h.b16 %v124
    %v669 = vunpack.c.l.b16 %v125
    %v670 = vunpack.c.h.b16 %v125
    %v671 = vunpack.c.l.b16 %v126
    %v672 = vunpack.c.h.b16 %v126
    %v673 = vunpack.c.l.b16 %v127
    %v674 = vunpack.c.h.b16 %v127
    %v675 = vunpack.c.l.b16 %v128
    %v676 = vunpack.c.h.b16 %v128
    %v677 = vunpack.c.l.b16 %v129
    %v678 = vunpack.c.h.b16 %v129
    %v679 = vunpack.c.l.b16 %v130
    %v680 = vunpack.c.h.b16 %v130
    %v681 = vunpack.c.l.b16 %v131
    %v682 = vunpack.c.h.b16 %v131
    %v683 = vunpack.c.l.b16 %v132
    %v684 = vunpack.c.h.b16 %v132
    %v685 = vunpack.c.l.b16 %v133
    %v686 = vunpack.c.h.b16 %v133
    %v687 = vunpack.c.l.b16 %v134
    %v688 = vunpack.c.h.b16 %v134
    %v689 = vunpack.c.l.b16 %v135
    %v690 = vunpack.c.h.b16 %v135
    %v691 = vunpack.c.l.b16 %v136
    %v692 = vunpack.c.h.b16 %v136
    %v693 = vunpack.c.l.b16 %v137
    %v694 = vunpack.c.h.b16 %v137
    %v695 = vunpack.c.l.b16 %v138
    %v696 = vunpack.c.h.b16 %v138
    %v697 = vunpack.c.l.b16 %v139
    %v698 = vunpack.c.h.b16 %v139
    %v699 = vunpack.c.l.b16 %v140
    %v700 = vunpack.c.h.b16 %v140
    %v701 = vunpack.c.l.b16 %v141
    %v702 = vunpack.c.h.b16 %v141
    %v703 = vunpack.c.l.b16 %v142
    %v704 = vunpack.c.h.b16 %v142
    %v705 = vunpack.c.l.b16 %v143
    %v706 = vunpack.c.h.b16 %v143
    %v707 = vunpack.c.l.b16 %v144
    %v708 = vunpack.c.h.b16 %v144
    %v709 = vunpack.c.l.b16 %v145
    %v710 = vunpack.c.h.b16 %v145
    %v711 = vunpack.c.l.b16 %v146
    %v712 = vunpack.c.h.b16 %v146
    %v713 = vunpack.c.l.b16 %v147
    %v714 = vunpack.c.h.b16 %v147
    %v715 = vunpack.c.l.b16 %v148
    %v716 = vunpack.c.h.b16 %v148
    %v717 = vunpack.c.l.b16 %v149
    %v718 = vunpack.c.h.b16 %v149
    %v719 = vunpack.c.l.b16 %v150
    %v720 = vunpack.c.h.b16 %v150
    %v721 = vunpack.c.l.b16 %v151
    %v722 = vunpack.c.h.b16 %v151
    %v723 = vunpack.c.l.b16 %v152
    %v724 = vunpack.c.h.b16 %v152
    %v725 = vunpack.c.l.b16 %v153
    %v726 = vunpack.c.h.b16 %v153
    %v727 = vunpack.c.l.b16 %v154
    %v728 = vunpack.c.h.b16 %v154
    %v729 = vunpack.c.l.b16 %v155
    %v730 = vunpack.c.h.b16 %v155
    %v731 = vunpack.c.l.b16 %v156
    %v732 = vunpack.c.h.b16 %v156
    %v733 = vunpack.c.l.b16 %v157
    %v734 = vunpack.c.h.b16 %v157
    %v735 = vunpack.c.l.b16 %v158
    %v736 = vunpack.c.h.b16 %v158
    %v737 = vunpack.c.l.b16 %v159
    %v738 = vunpack.c.h.b16 %v159
    %v739 = vunpack.c.l.b16 %v160
    %v740 = vunpack.c.h.b16 %v160
    %v741 = vunpack.c.l.b16 %v161
    %v742 = vunpack.c.h.b16 %v161
    %v743 = vunpack.c.l.b16 %v162
    %v744 = vunpack.c.h.b16 %v162
    %v745 = vunpack.c.l.b16 %v163
    %v746 = vunpack.c.h.b16 %v163
    %v747 = vunpack.c.l.b16 %v164
    %v748 = vunpack.c.h.b16 %v164
    %v749 = vunpack.c.l.b16 %v165
    %v750 = vunpack.c.h.b16 %v165
    %v751 = vunpack.c.l.b16 %v166
    %v752 = vunpack.c.h.b16 %v166
    %v753 = vunpack.c.l.b16 %v167
    %v754 = vunpack.c.h.b16 %v167
    %v755 = vunpack.c.l.b16 %v168
    %v756 = vunpack.c.h.b16 %v168
    %v757 = vunpack.c.l.b16 %v169
    %v758 = vunpack.c.h.b16 %v169
    %v759 = vunpack.c.l.b16 %v170
    %v760 = vunpack.c.h.b16 %v170
    %v761 = vunpack.c.l.b16 %v171
    %v762 = vunpack.c.h.b16 %v171
    %v763 = vunpack.c.l.b16 %v172
    %v764 = vunpack.c.h.b16 %v172
    %v765 = vunpack.c.l.b16 %v173
    %v766 = vunpack.c.h.b16 %v173
    %v767 = vunpack.c.l.b16 %v174
    %v768 = vunpack.c.h.b16 %v174
    %v769 = vunpack.c.l.b16 %v175
    %v770 = vunpack.c.h.b16 %v175
    %v771 = vunpack.c.l.b16 %v176
    %v772 = vunpack.c.h.b16 %v176
    %v773 = vunpack.c.l.b16 %v177
    %v774 = vunpack.c.h.b16 %v177
    %v775 = vunpack.c.l.b16 %v178
    %v776 = vunpack.c.h.b16 %v178
    %v777 = vunpack.c.l.b16 %v179
    %v778 = vunpack.c.h.b16 %v179
    %v779 = vunpack.c.l.b16 %v180
    %v780 = vunpack.c.h.b16 %v180
    %v781 = vunpack.c.l.b16 %v181
    %v782 = vunpack.c.h.b16 %v181
    %v783 = vunpack.c.l.b16 %v182
    %v784 = vunpack.c.h.b16 %v182
    %v785 = vunpack.c.l.b16 %v183
    %v786 = vunpack.c.h.b16 %v183
    %v787 = vunpack.c.l.b16 %v184
    %v788 = vunpack.c.h.b16 %v184
    %v789 = vunpack.c.l.b16 %v185
    %v790 = vunpack.c.h.b16 %v185
    %v791 = vunpack.c.l.b16 %v186
    %v792 = vunpack.c.h.b16 %v186
    %v793 = vunpack.c.l.b16 %v187
    %v794 = vunpack.c.h.b16 %v187
    %v795 = vunpack.c.l.b16 %v188
    %v796 = vunpack.c.h.b16 %v188
    %v797 = vunpack.c.l.b16 %v189
    %v798 = vunpack.c.h.b16 %v189
    %v799 = vunpack.c.l.b16 %v190
    %v800 = vunpack.c.h.b16 %v190
    %v801 = vunpack.c.l.b16 %v191
    %v802 = vunpack.c.h.b16 %v191
    %v803 = vunpack.c.l.b16 %v192
    %v804 = vunpack.c.h.b16 %v192
    %v805 = vunpack.c.l.b16 %v193
    %v806 = vunpack.c.h.b16 %v193
    %v807 = vunpack.c.l.b16 %v194
    %v808 = vunpack.c.h.b16 %v194
    %v809 = vunpack.c.l.b16 %v195
    %v810 = vunpack.c.h.b16 %v195
    %v811 = vunpack.c.l.b16 %v196
    %v812 = vunpack.c.h.b16 %v196
    %v813 = vunpack.c.l.b16 %v197
    %v814 = vunpack.c.h.b16 %v197
    %v815 = vunpack.c.l.b16 %v198
    %v816 = vunpack.c.h.b16 %v198
    %v817 = vunpack.c.l.b16 %v199
    %v818 = vunpack.c.h.b16 %v199
    %v819 = vunpack.c.l.b16 %v200
    %v820 = vunpack.c.h.b16 %v200
    %v821 = vunpack.c.l.b16 %v201
    %v822 = vunpack.c.h.b16 %v201
    %v823 = vunpack.c.l.b16 %v202
    %v824 = vunpack.c.h.b16 %v202
    %v825 = vunpack.c.l.b16 %v203
    %v826 = vunpack.c.h.b16 %v203
    %v827 = vunpack.c.l.b16 %v204
    %v828 = vunpack.c.h.b16 %v204
    %v829 = vunpack.c.l.b16 %v205
    %v830 = vunpack.c.h.b16 %v205
    %v831 = vunpack.c.l.b16 %v206
    %v832 = vunpack.c.h.b16 %v206
    %v833 = vunpack.c.l.b16 %v207
    %v834 = vunpack.c.h.b16 %v207
    %v835 = vunpack.c.l.b16 %v208
    %v836 = vunpack.c.h.b16 %v208
    %v837 = vunpack.c.l.b16 %v209
    %v838 = vunpack.c.h.b16 %v209
    %v839 = vunpack.c.l.b16 %v210
    %v840 = vunpack.c.h.b16 %v210
    %v841 = vunpack.c.l.b16 %v211
    %v842 = vunpack.c.h.b16 %v211
    %v843 = vunpack.c.l.b16 %v212
    %v844 = vunpack.c.h.b16 %v212
    %v845 = vunpack.c.l.b16 %v213
    %v846 = vunpack.c.h.b16 %v213
    %v847 = vunpack.c.l.b16 %v214
    %v848 = vunpack.c.h.b16 %v214
    %v849 = vunpack.c.l.b16 %v215
    %v850 = vunpack.c.h.b16 %v215
    %v851 = vunpack.c.l.b16 %v216
    %v852 = vunpack.c.h.b16 %v216
    %v853 = vunpack.c.l.b16 %v217
    %v854 = vunpack.c.h.b16 %v217
    %v855 = vunpack.c.l.b16 %v218
    %v856 = vunpack.c.h.b16 %v218
    %v857 = vunpack.c.l.b16 %v219
    %v858 = vunpack.c.h.b16 %v219
    %v859 = vunpack.c.l.b16 %v220
    %v860 = vunpack.c.h.b16 %v220
    %v861 = vunpack.c.l.b16 %v221
    %v862 = vunpack.c.h.b16 %v221
    %v863 = vunpack.c.l.b16 %v222
    %v864 = vunpack.c.h.b16 %v222
    %v865 = vunpack.c.l.b16 %v223
    %v866 = vunpack.c.h.b16 %v223
    %v867 = vunpack.c.l.b16 %v224
    %v868 = vunpack.c.h.b16 %v224
    %v869 = vunpack.c.l.b16 %v225
    %v870 = vunpack.c.h.b16 %v225
    %v871 = vpack.c.b16 %v483, %v479
    %v872 = vpack.c.b16 %v484, %v480
    %v873 = vpack.c.b16 %v485, %v481
    %v874 = vpack.c.b16 %v486, %v482
    %v875 = vpack.c.b16 %v491, %v487
    %v876 = vpack.c.b16 %v492, %v488
    %v877 = vpack.c.b16 %v493, %v489
    %v878 = vpack.c.b16 %v494, %v490
    %v879 = vpack.c.b16 %v499, %v495
    %v880 = vpack.c.b16 %v500, %v496
    %v881 = vpack.c.b16 %v501, %v497
    %v882 = vpack.c.b16 %v502, %v498
    %v883 = vpack.c.b16 %v507, %v503
    %v884 = vpack.c.b16 %v508, %v504
    %v885 = vpack.c.b16 %v509, %v505
    %v886 = vpack.c.b16 %v510, %v506
    %v887 = vpack.c.b16 %v515, %v511
    %v888 = vpack.c.b16 %v516, %v512
    %v889 = vpack.c.b16 %v517, %v513
    %v890 = vpack.c.b16 %v518, %v514
    %v891 = vpack.c.b16 %v523, %v519
    %v892 = vpack.c.b16 %v524, %v520
    %v893 = vpack.c.b16 %v525, %v521
    %v894 = vpack.c.b16 %v526, %v522
    %v895 = vpack.c.b16 %v531, %v527
    %v896 = vpack.c.b16 %v532, %v528
    %v897 = vpack.c.b16 %v533, %v529
    %v898 = vpack.c.b16 %v534, %v530
    %v899 = vpack.c.b16 %v539, %v535
    %v900 = vpack.c.b16 %v540, %v536
    %v901 = vpack.c.b16 %v541, %v537
    %v902 = vpack.c.b16 %v542, %v538
    %v903 = vpack.c.b16 %v547, %v543
    %v904 = vpack.c.b16 %v548, %v544
    %v905 = vpack.c.b16 %v549, %v545
    %v906 = vpack.c.b16 %v550, %v546
    %v907 = vpack.c.b16 %v555, %v551
    %v908 = vpack.c.b16 %v556, %v552
    %v909 = vpack.c.b16 %v557, %v553
    %v910 = vpack.c.b16 %v558, %v554
    %v911 = vpack.c.b16 %v563, %v559
    %v912 = vpack.c.b16 %v564, %v560
    %v913 = vpack.c.b16 %v565, %v561
    %v914 = vpack.c.b16 %v566, %v562
    %v915 = vpack.c.b16 %v571, %v567
    %v916 = vpack.c.b16 %v572, %v568
    %v917 = vpack.c.b16 %v573, %v569
    %v918 = vpack.c.b16 %v574, %v570
    %v919 = vpack.c.b16 %v579, %v575
    %v920 = vpack.c.b16 %v580, %v576
    %v921 = vpack.c.b16 %v581, %v577
    %v922 = vpack.c.b16 %v582, %v578
    %v923 = vpack.c.b16 %v587, %v583
    %v924 = vpack.c.b16 %v588, %v584
    %v925 = vpack.c.b16 %v589, %v585
    %v926 = vpack.c.b16 %v590, %v586
    %v927 = vpack.c.b16 %v595, %v591
    %v928 = vpack.c.b16 %v596, %v592
    %v929 = vpack.c.b16 %v597, %v593
    %v930 = vpack.c.b16 %v598, %v594
    %v931 = vpack.c.b16 %v603, %v599
    %v932 = vpack.c.b16 %v604, %v600
    %v933 = vpack.c.b16 %v605, %v601
    %v934 = vpack.c.b16 %v606, %v602
    %v935 = vpack.c.b16 %v611, %v607
    %v936 = vpack.c.b16 %v612, %v608
    %v937 = vpack.c.b16 %v613, %v609
    %v938 = vpack.c.b16 %v614, %v610
    %v939 = vpack.c.b16 %v619, %v615
    %v940 = vpack.c.b16 %v620, %v616
    %v941 = vpack.c.b16 %v621, %v617
    %v942 = vpack.c.b16 %v622, %v618
    %v943 = vpack.c.b16 %v627, %v623
    %v944 = vpack.c.b16 %v628, %v624
    %v945 = vpack.c.b16 %v629, %v625
    %v946 = vpack.c.b16 %v630, %v626
    %v947 = vpack.c.b16 %v635, %v631
    %v948 = vpack.c.b16 %v636, %v632
    %v949 = vpack.c.b16 %v637, %v633
    %v950 = vpack.c.b16 %v638, %v634
    %v951 = vpack.c.b16 %v643, %v639
    %v952 = vpack.c.b16 %v644, %v640
    %v953 = vpack.c.b16 %v645, %v641
    %v954 = vpack.c.b16 %v646, %v642
    %v955 = vpack.c.b16 %v651, %v647
    %v956 = vpack.c.b16 %v652, %v648
    %v957 = vpack.c.b16 %v653, %v649
    %v958 = vpack.c.b16 %v654, %v650
    %v959 = vpack.c.b16 %v659, %v655
    %v960 = vpack.c.b16 %v660, %v656
    %v961 = vpack.c.b16 %v661, %v657
    %v962 = vpack.c.b16 %v662, %v658
    %v963 = vpack.c.b16 %v667, %v663
    %v964 = vpack.c.b16 %v668, %v664
    %v965 = vpack.c.b16 %v669, %v665
    %v966 = vpack.c.b16 %v670, %v666
    %v967 = vpack.c.b16 %v675, %v671
    %v968 = vpack.c.b16 %v676, %v672
    %v969 = vpack.c.b16 %v677, %v673
    %v970 = vpack.c.b16 %v678, %v674
    %v971 = vpack.c.b16 %v683, %v679
    %v972 = vpack.c.b16 %v684, %v680
    %v973 = vpack.c.b16 %v685, %v681
    %v974 = vpack.c.b16 %v686, %v682
    %v975 = vpack.c.b16 %v691, %v687
    %v976 = vpack.c.b16 %v692, %v688
    %v977 = vpack.c.b16 %v693, %v689
    %v978 = vpack.c.b16 %v694, %v690
    %v979 = vpack.c.b16 %v699, %v695
    %v980 = vpack.c.b16 %v700, %v696
    %v981 = vpack.c.b16 %v701, %v697
    %v982 = vpack.c.b16 %v702, %v698
    %v983 = vpack.c.b16 %v707, %v703
    %v984 = vpack.c.b16 %v708, %v704
    %v985 = vpack.c.b16 %v709, %v705
    %v986 = vpack.c.b16 %v710, %v706
    %v987 = vpack.c.b16 %v715, %v711
    %v988 = vpack.c.b16 %v716, %v712
    %v989 = vpack.c.b16 %v717, %v713
    %v990 = vpack.c.b16 %v718, %v714
    %v991 = vpack.c.b16 %v723, %v719
    %v992 = vpack.c.b16 %v724, %v720
    %v993 = vpack.c.b16 %v725, %v721
    %v994 = vpack.c.b16 %v726, %v722
    %v995 = vpack.c.b16 %v731, %v727
    %v996 = vpack.c.b16 %v732, %v728
    %v997 = vpack.c.b16 %v733, %v729
    %v998 = vpack.c.b16 %v734, %v730
    %v999 = vpack.c.b16 %v739, %v735
    %v1000 = vpack.c.b16 %v740, %v736
    %v1001 = vpack.c.b16 %v741, %v737
    %v1002 = vpack.c.b16 %v742, %v738
    %v1003 = vpack.c.b16 %v747, %v743
    %v1004 = vpack.c.b16 %v748, %v744
    %v1005 = vpack.c.b16 %v749, %v745
    %v1006 = vpack.c.b16 %v750, %v746
    %v1007 = vpack.c.b16 %v755, %v751
    %v1008 = vpack.c.b16 %v756, %v752
    %v1009 = vpack.c.b16 %v757, %v753
    %v1010 = vpack.c.b16 %v758, %v754
    %v1011 = vpack.c.b16 %v763, %v759
    %v1012 = vpack.c.b16 %v764, %v760
    %v1013 = vpack.c.b16 %v765, %v761
    %v1014 = vpack.c.b16 %v766, %v762
    %v1015 = vpack.c.b16 %v771, %v767
    %v1016 = vpack.c.b16 %v772, %v768
    %v1017 = vpack.c.b16 %v773, %v769
    %v1018 = vpack.c.b16 %v774, %v770
    %v1019 = vpack.c.b16 %v779, %v775
    %v1020 = vpack.c.b16 %v780, %v776
    %v1021 = vpack.c.b16 %v781, %v777
    %v1022 = vpack.c.b16 %v782, %v778
    %v1023 = vpack.c.b16 %v787, %v783
    %v1024 = vpack.c.b16 %v788, %v784
    %v1025 = vpack.c.b16 %v789, %v785
    %v1026 = vpack.c.b16 %v790, %v786
    %v1027 = vpack.c.b16 %v795, %v791
    %v1028 = vpack.c.b16 %v796, %v792
    %v1029 = vpack.c.b16 %v797, %v793
    %v1030 = vpack.c.b16 %v798, %v794
    %v1031 = vpack.c.b16 %v803, %v799
    %v1032 = vpack.c.b16 %v804, %v800
    %v1033 = vpack.c.b16 %v805, %v801
    %v1034 = vpack.c.b16 %v806, %v802
    %v1035 = vpack.c.b16 %v811, %v807
    %v1036 = vpack.c.b16 %v812, %v808
    %v1037 = vpack.c.b16 %v813, %v809
    %v1038 = vpack.c.b16 %v814, %v810
    %v1039 = vpack.c.b16 %v819, %v815
    %v1040 = vpack.c.b16 %v820, %v816
    %v1041 = vpack.c.b16 %v821, %v817
    %v1042 = vpack.c.b16 %v822, %v818
    %v1043 = vpack.c.b16 %v827, %v823
    %v1044 = vpack.c.b16 %v828, %v824
    %v1045 = vpack.c.b16 %v829, %v825
    %v1046 = vpack.c.b16 %v830, %v826
    %v1047 = vpack.c.b16 %v835, %v831
    %v1048 = vpack.c.b16 %v836, %v832
    %v1049 = vpack.c.b16 %v837, %v833
    %v1050 = vpack.c.b16 %v838, %v834
    %v1051 = vpack.c.b16 %v843, %v839
    %v1052 = vpack.c.b16 %v844, %v840
    %v1053 = vpack.c.b16 %v845, %v841
    %v1054 = vpack.c.b16 %v846, %v842
    %v1055 = vpack.c.b16 %v851, %v847
    %v1056 = vpack.c.b16 %v852, %v848
    %v1057 = vpack.c.b16 %v853, %v849
    %v1058 = vpack.c.b16 %v854, %v850
    %v1059 = vpack.c.b16 %v859, %v855
    %v1060 = vpack.c.b16 %v860, %v856
    %v1061 = vpack.c.b16 %v861, %v857
    %v1062 = vpack.c.b16 %v862, %v858
    %v1063 = vpack.c.b16 %v867, %v863
    %v1064 = vpack.c.b16 %v868, %v864
    %v1065 = vpack.c.b16 %v869, %v865
    %v1066 = vpack.c.b16 %v870, %v866
    %vm1263 = vcmask 130048
    %v1265 = vsel %vm1263, %v276, 0
    %1267 = vmatprep.subr.bf16.mxu0 %v872
    %1268 = vmatpush1.bf16.msra.mxu0 %v871
    %1269 = vmatprep.subr.bf16.mxu0 %v876
    %1270 = vmatpush1.bf16.msra.mxu0 %v875
    %1271 = vmatprep.subr.bf16.mxu0 %v880
    %1272 = vmatpush1.bf16.msra.mxu0 %v879
    %1273 = vmatprep.subr.bf16.mxu0 %v884
    %1274 = vmatpush1.bf16.msra.mxu0 %v883
    %1275 = vmatprep.subr.bf16.mxu0 %v888
    %1276 = vmatpush1.bf16.msra.mxu0 %v887
    %1277 = vmatprep.subr.bf16.mxu0 %v892
    %1278 = vmatpush1.bf16.msra.mxu0 %v891
    %1279 = vmatprep.subr.bf16.mxu0 %v896
    %1280 = vmatpush1.bf16.msra.mxu0 %v895
    %1281 = vmatprep.subr.bf16.mxu0 %v900
    %1282 = vmatpush1.bf16.msra.mxu0 %v899
    %1283 = vmatprep.subr.bf16.mxu0 %v904
    %1284 = vmatpush1.bf16.msra.mxu0 %v903
    %1285 = vmatprep.subr.bf16.mxu0 %v908
    %1286 = vmatpush1.bf16.msra.mxu0 %v907
    %1287 = vmatprep.subr.bf16.mxu0 %v912
    %1288 = vmatpush1.bf16.msra.mxu0 %v911
    %1289 = vmatprep.subr.bf16.mxu0 %v916
    %1290 = vmatpush1.bf16.msra.mxu0 %v915
    %1291 = vmatprep.subr.bf16.mxu0 %v920
    %1292 = vmatpush1.bf16.msra.mxu0 %v919
    %1293 = vmatprep.subr.bf16.mxu0 %v924
    %1294 = vmatpush1.bf16.msra.mxu0 %v923
    %1295 = vmatprep.subr.bf16.mxu0 %v928
    %1296 = vmatpush1.bf16.msra.mxu0 %v927
    %1297 = vmatprep.subr.bf16.mxu0 %v932
    %1298 = vmatpush1.bf16.msra.mxu0 %v931
    %1299 = vmatprep.mubr.bf16.mxu0 %v271
    %1300 = vmatmul.mubr.bf16.gmra.mrb[0].mxu0 %v270
    %v1301 = vpop.f32.mrb[0].mxu0
    %v1302 = vadd.f32 %v231, %v1301
    %v1303 = vpop.f32.mrb[0].mxu0
    %v1304 = vadd.f32 %v235, %v1303
    %v1305 = vpop.f32.mrb[0].mxu0
    %v1306 = vadd.f32 %v231, %v1305
    %v1307 = vpop.f32.mrb[0].mxu0
    %v1308 = vadd.f32 %v235, %v1307
    %1309 = vdwg.mxu0
    %1310 = vmatprep.subr.bf16.mxu0 %v936
    %1311 = vmatpush1.bf16.msra.mxu0 %v935
    %1312 = vmatprep.subr.bf16.mxu0 %v940
    %1313 = vmatpush1.bf16.msra.mxu0 %v939
    %1314 = vmatprep.subr.bf16.mxu0 %v944
    %1315 = vmatpush1.bf16.msra.mxu0 %v943
    %1316 = vmatprep.subr.bf16.mxu0 %v948
    %1317 = vmatpush1.bf16.msra.mxu0 %v947
    %1318 = vmatprep.subr.bf16.mxu0 %v952
    %1319 = vmatpush1.bf16.msra.mxu0 %v951
    %1320 = vmatprep.subr.bf16.mxu0 %v956
    %1321 = vmatpush1.bf16.msra.mxu0 %v955
    %1322 = vmatprep.subr.bf16.mxu0 %v960
    %1323 = vmatpush1.bf16.msra.mxu0 %v959
    %1324 = vmatprep.subr.bf16.mxu0 %v964
    %1325 = vmatpush1.bf16.msra.mxu0 %v963
    %1326 = vmatprep.subr.bf16.mxu0 %v968
    %1327 = vmatpush1.bf16.msra.mxu0 %v967
    %1328 = vmatprep.subr.bf16.mxu0 %v972
    %1329 = vmatpush1.bf16.msra.mxu0 %v971
    %1330 = vmatprep.subr.bf16.mxu0 %v976
    %1331 = vmatpush1.bf16.msra.mxu0 %v975
    %1332 = vmatprep.subr.bf16.mxu0 %v980
    %1333 = vmatpush1.bf16.msra.mxu0 %v979
    %1334 = vmatprep.subr.bf16.mxu0 %v984
    %1335 = vmatpush1.bf16.msra.mxu0 %v983
    %1336 = vmatprep.subr.bf16.mxu0 %v988
    %1337 = vmatpush1.bf16.msra.mxu0 %v987
    %1338 = vmatprep.subr.bf16.mxu0 %v992
    %1339 = vmatpush1.bf16.msra.mxu0 %v991
    %1340 = vmatprep.subr.bf16.mxu0 %v996
    %1341 = vmatpush1.bf16.msra.mxu0 %v995
    %1342 = vmatprep.mubr.bf16.mxu0 %v273
    %1343 = vmatmul.mubr.bf16.gmra.mrb[0].mxu0 %v272
    %v1344 = vpop.f32.mrb[0].mxu0
    %v1345 = vadd.f32 %v1302, %v1344
    %v1346 = vpop.f32.mrb[0].mxu0
    %v1347 = vadd.f32 %v1304, %v1346
    %v1348 = vpop.f32.mrb[0].mxu0
    %v1349 = vadd.f32 %v1306, %v1348
    %v1350 = vpop.f32.mrb[0].mxu0
    %v1351 = vadd.f32 %v1308, %v1350
    %1352 = vdwg.mxu0
    %1353 = vmatprep.subr.bf16.mxu0 %v1000
    %1354 = vmatpush1.bf16.msra.mxu0 %v999
    %1355 = vmatprep.subr.bf16.mxu0 %v1004
    %1356 = vmatpush1.bf16.msra.mxu0 %v1003
    %1357 = vmatprep.subr.bf16.mxu0 %v1008
    %1358 = vmatpush1.bf16.msra.mxu0 %v1007
    %1359 = vmatprep.subr.bf16.mxu0 %v1012
    %1360 = vmatpush1.bf16.msra.mxu0 %v1011
    %1361 = vmatprep.subr.bf16.mxu0 %v1016
    %1362 = vmatpush1.bf16.msra.mxu0 %v1015
    %1363 = vmatprep.subr.bf16.mxu0 %v1020
    %1364 = vmatpush1.bf16.msra.mxu0 %v1019
    %1365 = vmatprep.subr.bf16.mxu0 %v1024
    %1366 = vmatpush1.bf16.msra.mxu0 %v1023
    %1367 = vmatprep.subr.bf16.mxu0 %v1028
    %1368 = vmatpush1.bf16.msra.mxu0 %v1027
    %1369 = vmatprep.subr.bf16.mxu0 %v1032
    %1370 = vmatpush1.bf16.msra.mxu0 %v1031
    %1371 = vmatprep.subr.bf16.mxu0 %v1036
    %1372 = vmatpush1.bf16.msra.mxu0 %v1035
    %1373 = vmatprep.subr.bf16.mxu0 %v1040
    %1374 = vmatpush1.bf16.msra.mxu0 %v1039
    %1375 = vmatprep.subr.bf16.mxu0 %v1044
    %1376 = vmatpush1.bf16.msra.mxu0 %v1043
    %1377 = vmatprep.subr.bf16.mxu0 %v1048
    %1378 = vmatpush1.bf16.msra.mxu0 %v1047
    %1379 = vmatprep.subr.bf16.mxu0 %v1052
    %1380 = vmatpush1.bf16.msra.mxu0 %v1051
    %1381 = vmatprep.subr.bf16.mxu0 %v1056
    %1382 = vmatpush1.bf16.msra.mxu0 %v1055
    %1383 = vmatprep.subr.bf16.mxu0 %v1060
    %1384 = vmatpush1.bf16.msra.mxu0 %v1059
    %1385 = vmatprep.mubr.bf16.mxu0 %v275
    %1386 = vmatmul.mubr.bf16.gmra.mrb[0].mxu0 %v274
    %v1387 = vpop.f32.mrb[0].mxu0
    %v1388 = vadd.f32 %v1345, %v1387
    %v1389 = vpop.f32.mrb[0].mxu0
    %v1390 = vadd.f32 %v1347, %v1389
    %v1391 = vpop.f32.mrb[0].mxu0
    %v1392 = vadd.f32 %v1349, %v1391
    %v1393 = vpop.f32.mrb[0].mxu0
    %v1394 = vadd.f32 %v1351, %v1393
    %1395 = vdwg.mxu0
    %1396 = vmatprep.subr.bf16.mxu0 %v1064
    %1397 = vmatpush1.bf16.msra.mxu0 %v1063
    %1398 = vmatprep.subr.bf16.mxu0 0
    %1399 = vmatpush1.bf16.msra.mxu0 0
    %1400 = vmatprep.subr.bf16.mxu0 0
    %1401 = vmatpush1.bf16.msra.mxu0 0
    %1402 = vmatprep.subr.bf16.mxu0 0
    %1403 = vmatpush1.bf16.msra.mxu0 0
    %1404 = vmatprep.subr.bf16.mxu0 0
    %1405 = vmatpush1.bf16.msra.mxu0 0
    %1406 = vmatprep.subr.bf16.mxu0 0
    %1407 = vmatpush1.bf16.msra.mxu0 0
    %1408 = vmatprep.subr.bf16.mxu0 0
    %1409 = vmatpush1.bf16.msra.mxu0 0
    %1410 = vmatprep.subr.bf16.mxu0 0
    %1411 = vmatpush1.bf16.msra.mxu0 0
    %1412 = vmatprep.subr.bf16.mxu0 0
    %1413 = vmatpush1.bf16.msra.mxu0 0
    %1414 = vmatprep.subr.bf16.mxu0 0
    %1415 = vmatpush1.bf16.msra.mxu0 0
    %1416 = vmatprep.subr.bf16.mxu0 0
    %1417 = vmatpush1.bf16.msra.mxu0 0
    %1418 = vmatprep.subr.bf16.mxu0 0
    %1419 = vmatpush1.bf16.msra.mxu0 0
    %1420 = vmatprep.subr.bf16.mxu0 0
    %1421 = vmatpush1.bf16.msra.mxu0 0
    %1422 = vmatprep.subr.bf16.mxu0 0
    %1423 = vmatpush1.bf16.msra.mxu0 0
    %1424 = vmatprep.subr.bf16.mxu0 0
    %1425 = vmatpush1.bf16.msra.mxu0 0
    %1426 = vmatprep.subr.bf16.mxu0 0
    %1427 = vmatpush1.bf16.msra.mxu0 0
    %1428 = vmatprep.mubr.bf16.mxu0 0
    %1429 = vmatmul.mubr.bf16.gmra.mrb[0].mxu0 %v1265
    %v1430 = vpop.f32.mrb[0].mxu0
    %v1431 = vadd.f32 %v1388, %v1430
    %v1432 = vpop.f32.mrb[0].mxu0
    %v1433 = vadd.f32 %v1390, %v1432
    %v1434 = vpop.f32.mrb[0].mxu0
    %v1435 = vadd.f32 %v1392, %v1434
    %v1436 = vpop.f32.mrb[0].mxu0
    %v1437 = vadd.f32 %v1394, %v1436
    %1438 = vdwg.mxu0
    %1439 = vmatprep.subr.bf16.mxu0 %v874
    %1440 = vmatpush1.bf16.msra.mxu0 %v873
    %1441 = vmatprep.subr.bf16.mxu0 %v878
    %1442 = vmatpush1.bf16.msra.mxu0 %v877
    %1443 = vmatprep.subr.bf16.mxu0 %v882
    %1444 = vmatpush1.bf16.msra.mxu0 %v881
    %1445 = vmatprep.subr.bf16.mxu0 %v886
    %1446 = vmatpush1.bf16.msra.mxu0 %v885
    %1447 = vmatprep.subr.bf16.mxu0 %v890
    %1448 = vmatpush1.bf16.msra.mxu0 %v889
    %1449 = vmatprep.subr.bf16.mxu0 %v894
    %1450 = vmatpush1.bf16.msra.mxu0 %v893
    %1451 = vmatprep.subr.bf16.mxu0 %v898
    %1452 = vmatpush1.bf16.msra.mxu0 %v897
    %1453 = vmatprep.subr.bf16.mxu0 %v902
    %1454 = vmatpush1.bf16.msra.mxu0 %v901
    %1455 = vmatprep.subr.bf16.mxu0 %v906
    %1456 = vmatpush1.bf16.msra.mxu0 %v905
    %1457 = vmatprep.subr.bf16.mxu0 %v910
    %1458 = vmatpush1.bf16.msra.mxu0 %v909
    %1459 = vmatprep.subr.bf16.mxu0 %v914
    %1460 = vmatpush1.bf16.msra.mxu0 %v913
    %1461 = vmatprep.subr.bf16.mxu0 %v918
    %1462 = vmatpush1.bf16.msra.mxu0 %v917
    %1463 = vmatprep.subr.bf16.mxu0 %v922
    %1464 = vmatpush1.bf16.msra.mxu0 %v921
    %1465 = vmatprep.subr.bf16.mxu0 %v926
    %1466 = vmatpush1.bf16.msra.mxu0 %v925
    %1467 = vmatprep.subr.bf16.mxu0 %v930
    %1468 = vmatpush1.bf16.msra.mxu0 %v929
    %1469 = vmatprep.subr.bf16.mxu0 %v934
    %1470 = vmatpush1.bf16.msra.mxu0 %v933
    %1471 = vmatprep.mubr.bf16.mxu0 %v271
    %1472 = vmatmul.mubr.bf16.gmra.mrb[0].mxu0 %v270
    %v1473 = vpop.f32.mrb[0].mxu0
    %v1474 = vadd.f32 %v239, %v1473
    %v1475 = vpop.f32.mrb[0].mxu0
    %v1476 = vadd.f32 %v243, %v1475
    %v1477 = vpop.f32.mrb[0].mxu0
    %v1478 = vadd.f32 %v239, %v1477
    %v1479 = vpop.f32.mrb[0].mxu0
    %v1480 = vadd.f32 %v243, %v1479
    %1481 = vdwg.mxu0
    %1482 = vmatprep.subr.bf16.mxu0 %v938
    %1483 = vmatpush1.bf16.msra.mxu0 %v937
    %1484 = vmatprep.subr.bf16.mxu0 %v942
    %1485 = vmatpush1.bf16.msra.mxu0 %v941
    %1486 = vmatprep.subr.bf16.mxu0 %v946
    %1487 = vmatpush1.bf16.msra.mxu0 %v945
    %1488 = vmatprep.subr.bf16.mxu0 %v950
    %1489 = vmatpush1.bf16.msra.mxu0 %v949
    %1490 = vmatprep.subr.bf16.mxu0 %v954
    %1491 = vmatpush1.bf16.msra.mxu0 %v953
    %1492 = vmatprep.subr.bf16.mxu0 %v958
    %1493 = vmatpush1.bf16.msra.mxu0 %v957
    %1494 = vmatprep.subr.bf16.mxu0 %v962
    %1495 = vmatpush1.bf16.msra.mxu0 %v961
    %1496 = vmatprep.subr.bf16.mxu0 %v966
    %1497 = vmatpush1.bf16.msra.mxu0 %v965
    %1498 = vmatprep.subr.bf16.mxu0 %v970
    %1499 = vmatpush1.bf16.msra.mxu0 %v969
    %1500 = vmatprep.subr.bf16.mxu0 %v974
    %1501 = vmatpush1.bf16.msra.mxu0 %v973
    %1502 = vmatprep.subr.bf16.mxu0 %v978
    %1503 = vmatpush1.bf16.msra.mxu0 %v977
    %1504 = vmatprep.subr.bf16.mxu0 %v982
    %1505 = vmatpush1.bf16.msra.mxu0 %v981
    %1506 = vmatprep.subr.bf16.mxu0 %v986
    %1507 = vmatpush1.bf16.msra.mxu0 %v985
    %1508 = vmatprep.subr.bf16.mxu0 %v990
    %1509 = vmatpush1.bf16.msra.mxu0 %v989
    %1510 = vmatprep.subr.bf16.mxu0 %v994
    %1511 = vmatpush1.bf16.msra.mxu0 %v993
    %1512 = vmatprep.subr.bf16.mxu0 %v998
    %1513 = vmatpush1.bf16.msra.mxu0 %v997
    %1514 = vmatprep.mubr.bf16.mxu0 %v273
    %1515 = vmatmul.mubr.bf16.gmra.mrb[0].mxu0 %v272
    %v1516 = vpop.f32.mrb[0].mxu0
    %v1517 = vadd.f32 %v1474, %v1516
    %v1518 = vpop.f32.mrb[0].mxu0
    %v1519 = vadd.f32 %v1476, %v1518
    %v1520 = vpop.f32.mrb[0].mxu0
    %v1521 = vadd.f32 %v1478, %v1520
    %v1522 = vpop.f32.mrb[0].mxu0
    %v1523 = vadd.f32 %v1480, %v1522
    %1524 = vdwg.mxu0
    %1525 = vmatprep.subr.bf16.mxu0 %v1002
    %1526 = vmatpush1.bf16.msra.mxu0 %v1001
    %1527 = vmatprep.subr.bf16.mxu0 %v1006
    %1528 = vmatpush1.bf16.msra.mxu0 %v1005
    %1529 = vmatprep.subr.bf16.mxu0 %v1010
    %1530 = vmatpush1.bf16.msra.mxu0 %v1009
    %1531 = vmatprep.subr.bf16.mxu0 %v1014
    %1532 = vmatpush1.bf16.msra.mxu0 %v1013
    %1533 = vmatprep.subr.bf16.mxu0 %v1018
    %1534 = vmatpush1.bf16.msra.mxu0 %v1017
    %1535 = vmatprep.subr.bf16.mxu0 %v1022
    %1536 = vmatpush1.bf16.msra.mxu0 %v1021
    %1537 = vmatprep.subr.bf16.mxu0 %v1026
    %1538 = vmatpush1.bf16.msra.mxu0 %v1025
    %1539 = vmatprep.subr.bf16.mxu0 %v1030
    %1540 = vmatpush1.bf16.msra.mxu0 %v1029
    %1541 = vmatprep.subr.bf16.mxu0 %v1034
    %1542 = vmatpush1.bf16.msra.mxu0 %v1033
    %1543 = vmatprep.subr.bf16.mxu0 %v1038
    %1544 = vmatpush1.bf16.msra.mxu0 %v1037
    %1545 = vmatprep.subr.bf16.mxu0 %v1042
    %1546 = vmatpush1.bf16.msra.mxu0 %v1041
    %1547 = vmatprep.subr.bf16.mxu0 %v1046
    %1548 = vmatpush1.bf16.msra.mxu0 %v1045
    %1549 = vmatprep.subr.bf16.mxu0 %v1050
    %1550 = vmatpush1.bf16.msra.mxu0 %v1049
    %1551 = vmatprep.subr.bf16.mxu0 %v1054
    %1552 = vmatpush1.bf16.msra.mxu0 %v1053
    %1553 = vmatprep.subr.bf16.mxu0 %v1058
    %1554 = vmatpush1.bf16.msra.mxu0 %v1057
    %1555 = vmatprep.subr.bf16.mxu0 %v1062
    %1556 = vmatpush1.bf16.msra.mxu0 %v1061
    %1557 = vmatprep.mubr.bf16.mxu0 %v275
    %1558 = vmatmul.mubr.bf16.gmra.mrb[0].mxu0 %v274
    %v1559 = vpop.f32.mrb[0].mxu0
    %v1560 = vadd.f32 %v1517, %v1559
    %v1561 = vpop.f32.mrb[0].mxu0
    %v1562 = vadd.f32 %v1519, %v1561
    %v1563 = vpop.f32.mrb[0].mxu0
    %v1564 = vadd.f32 %v1521, %v1563
    %v1565 = vpop.f32.mrb[0].mxu0
    %v1566 = vadd.f32 %v1523, %v1565
    %1567 = vdwg.mxu0
    %1568 = vmatprep.subr.bf16.mxu0 %v1066
    %1569 = vmatpush1.bf16.msra.mxu0 %v1065
    %1570 = vmatprep.subr.bf16.mxu0 0
    %1571 = vmatpush1.bf16.msra.mxu0 0
    %1572 = vmatprep.subr.bf16.mxu0 0
    %1573 = vmatpush1.bf16.msra.mxu0 0
    %1574 = vmatprep.subr.bf16.mxu0 0
    %1575 = vmatpush1.bf16.msra.mxu0 0
    %1576 = vmatprep.subr.bf16.mxu0 0
    %1577 = vmatpush1.bf16.msra.mxu0 0
    %1578 = vmatprep.subr.bf16.mxu0 0
    %1579 = vmatpush1.bf16.msra.mxu0 0
    %1580 = vmatprep.subr.bf16.mxu0 0
    %1581 = vmatpush1.bf16.msra.mxu0 0
    %1582 = vmatprep.subr.bf16.mxu0 0
    %1583 = vmatpush1.bf16.msra.mxu0 0
    %1584 = vmatprep.subr.bf16.mxu0 0
    %1585 = vmatpush1.bf16.msra.mxu0 0
    %1586 = vmatprep.subr.bf16.mxu0 0
    %1587 = vmatpush1.bf16.msra.mxu0 0
    %1588 = vmatprep.subr.bf16.mxu0 0
    %1589 = vmatpush1.bf16.msra.mxu0 0
    %1590 = vmatprep.subr.bf16.mxu0 0
    %1591 = vmatpush1.bf16.msra.mxu0 0
    %1592 = vmatprep.subr.bf16.mxu0 0
    %1593 = vmatpush1.bf16.msra.mxu0 0
    %1594 = vmatprep.subr.bf16.mxu0 0
    %1595 = vmatpush1.bf16.msra.mxu0 0
    %1596 = vmatprep.subr.bf16.mxu0 0
    %1597 = vmatpush1.bf16.msra.mxu0 0
    %1598 = vmatprep.subr.bf16.mxu0 0
    %1599 = vmatpush1.bf16.msra.mxu0 0
    %1600 = vmatprep.mubr.bf16.mxu0 0
    %1601 = vmatmul.mubr.bf16.gmra.mrb[0].mxu0 %v1265
    %v1602 = vpop.f32.mrb[0].mxu0
    %v1603 = vadd.f32 %v1560, %v1602
    %v1604 = vpop.f32.mrb[0].mxu0
    %v1605 = vadd.f32 %v1562, %v1604
    %v1606 = vpop.f32.mrb[0].mxu0
    %v1607 = vadd.f32 %v1564, %v1606
    %v1608 = vpop.f32.mrb[0].mxu0
    %v1609 = vadd.f32 %v1566, %v1608
    %1610 = vdwg.mxu0
    %v1611 = vmax.f32 %v1431, 0.0
    %v1612 = vmax.f32 %v1433, 0.0
    %v1613 = vmax.f32 %v1603, 0.0
    %v1614 = vmax.f32 %v1605, 0.0
    %v1615 = vmax.f32 %v1435, 0.0
    %v1616 = vmax.f32 %v1437, 0.0
    %v1617 = vmax.f32 %v1607, 0.0
    %v1618 = vmax.f32 %v1609, 0.0
    %v1619 = vpack.c.bf16 %v1615, %v1611
    %v1620 = vpack.c.bf16 %v1616, %v1612
    %v1621 = vpack.c.bf16 %v1617, %v1613
    %v1622 = vpack.c.bf16 %v1618, %v1614
    %v1623 = vld [vmem:[%s3] sm:$0xf]
    %v1624 = vld [vmem:[%s3 + $0x4] sm:$0xf]
    %v1625 = vld [vmem:[%s3 + $0x8] sm:$0xf]
    %v1626 = vld [vmem:[%s3 + $0xc] sm:$0xf]
    %v1627 = vld [vmem:[%s3 + $0x10] sm:$0xf]
    %v1628 = vld [vmem:[%s3 + $0x14] sm:$0xf]
    %v1629 = vld [vmem:[%s3 + $0x18] sm:$0xf]
    %v1630 = vld [vmem:[%s3 + $0x1c] sm:$0xf]
    %v1631 = vld [vmem:[%s3 + $0x20] sm:$0xf]
    %v1632 = vld [vmem:[%s3 + $0x24] sm:$0xf]
    %v1633 = vld [vmem:[%s3 + $0x28] sm:$0xf]
    %v1634 = vld [vmem:[%s3 + $0x2c] sm:$0xf]
    %v1635 = vld [vmem:[%s3 + $0x30] sm:$0xf]
    %v1636 = vld [vmem:[%s3 + $0x34] sm:$0xf]
    %v1637 = vld [vmem:[%s3 + $0x38] sm:$0xf]
    %v1638 = vld [vmem:[%s3 + $0x3c] sm:$0xf]
    %v1639 = vld [vmem:[%s3 + $0x40] sm:$0xf]
    %v1640 = vld [vmem:[%s3 + $0x44] sm:$0xf]
    %v1641 = vld [vmem:[%s3 + $0x48] sm:$0xf]
    %v1642 = vld [vmem:[%s3 + $0x4c] sm:$0xf]
    %v1643 = vld [vmem:[%s3 + $0x50] sm:$0xf]
    %v1644 = vld [vmem:[%s3 + $0x54] sm:$0xf]
    %v1645 = vld [vmem:[%s3 + $0x58] sm:$0xf]
    %v1646 = vld [vmem:[%s3 + $0x5c] sm:$0xf]
    %v1647 = vld [vmem:[%s3 + $0x60] sm:$0xf]
    %v1648 = vld [vmem:[%s3 + $0x64] sm:$0xf]
    %v1649 = vld [vmem:[%s3 + $0x68] sm:$0xf]
    %v1650 = vld [vmem:[%s3 + $0x6c] sm:$0xf]
    %v1651 = vld [vmem:[%s3 + $0x70] sm:$0xf]
    %v1652 = vld [vmem:[%s3 + $0x74] sm:$0xf]
    %v1653 = vld [vmem:[%s3 + $0x78] sm:$0xf]
    %v1654 = vld [vmem:[%s3 + $0x7c] sm:$0xf]
    %v1655 = vld [vmem:[%s3 + $0x80] sm:$0xf]
    %v1656 = vld [vmem:[%s3 + $0x84] sm:$0xf]
    %v1657 = vld [vmem:[%s3 + $0x88] sm:$0xf]
    %v1658 = vld [vmem:[%s3 + $0x8c] sm:$0xf]
    %v1659 = vld [vmem:[%s3 + $0x90] sm:$0xf]
    %v1660 = vld [vmem:[%s3 + $0x94] sm:$0xf]
    %v1661 = vld [vmem:[%s3 + $0x98] sm:$0xf]
    %v1662 = vld [vmem:[%s3 + $0x9c] sm:$0xf]
    %v1663 = vld [vmem:[%s3 + $0xa0] sm:$0xf]
    %v1664 = vld [vmem:[%s3 + $0xa4] sm:$0xf]
    %v1665 = vld [vmem:[%s3 + $0xa8] sm:$0xf]
    %v1666 = vld [vmem:[%s3 + $0xac] sm:$0xf]
    %v1667 = vld [vmem:[%s3 + $0xb0] sm:$0xf]
    %v1668 = vld [vmem:[%s3 + $0xb4] sm:$0xf]
    %v1669 = vld [vmem:[%s3 + $0xb8] sm:$0xf]
    %v1670 = vld [vmem:[%s3 + $0xbc] sm:$0xf]
    %v1671 = vld [vmem:[%s3 + $0xc0] sm:$0xf]
    %v1672 = vld [vmem:[%s3 + $0xc4] sm:$0xf]
    %v1673 = vld [vmem:[%s3 + $0xc8] sm:$0xf]
    %v1674 = vld [vmem:[%s3 + $0xcc] sm:$0xf]
    %v1675 = vld [vmem:[%s3 + $0xd0] sm:$0xf]
    %v1676 = vld [vmem:[%s3 + $0xd4] sm:$0xf]
    %v1677 = vld [vmem:[%s3 + $0xd8] sm:$0xf]
    %v1678 = vld [vmem:[%s3 + $0xdc] sm:$0xf]
    %v1679 = vld [vmem:[%s3 + $0xe0] sm:$0xf]
    %v1680 = vld [vmem:[%s3 + $0xe4] sm:$0xf]
    %v1681 = vld [vmem:[%s3 + $0xe8] sm:$0xf]
    %v1682 = vld [vmem:[%s3 + $0xec] sm:$0xf]
    %v1683 = vld [vmem:[%s3 + $0xf0] sm:$0xf]
    %v1684 = vld [vmem:[%s3 + $0xf4] sm:$0xf]
    %v1685 = vld [vmem:[%s3 + $0xf8] sm:$0xf]
    %v1686 = vld [vmem:[%s3 + $0xfc] sm:$0xf]
    %v1687 = vld [vmem:[%s4] sm:$0x1]
    %v1689 = vlaneseq
    %v1690 = vshrl.u32 %v1689, 7
    %v1691 = vsub.s32 0, %v1690
    %v1692 = vrot.slane %v1687, %v1691
    %v1758 = vunpack.c.l.b16 %v1623
    %v1759 = vunpack.c.l.b16 %v1624
    %v1760 = vunpack.c.l.b16 %v1625
    %v1761 = vunpack.c.l.b16 %v1626
    %v1762 = vunpack.c.l.b16 %v1627
    %v1763 = vunpack.c.l.b16 %v1628
    %v1764 = vunpack.c.l.b16 %v1629
    %v1765 = vunpack.c.l.b16 %v1630
    %v1766 = vunpack.c.l.b16 %v1631
    %v1767 = vunpack.c.l.b16 %v1632
    %v1768 = vunpack.c.l.b16 %v1633
    %v1769 = vunpack.c.l.b16 %v1634
    %v1770 = vunpack.c.l.b16 %v1635
    %v1771 = vunpack.c.l.b16 %v1636
    %v1772 = vunpack.c.l.b16 %v1637
    %v1773 = vunpack.c.l.b16 %v1638
    %v1774 = vunpack.c.l.b16 %v1639
    %v1775 = vunpack.c.l.b16 %v1640
    %v1776 = vunpack.c.l.b16 %v1641
    %v1777 = vunpack.c.l.b16 %v1642
    %v1778 = vunpack.c.l.b16 %v1643
    %v1779 = vunpack.c.l.b16 %v1644
    %v1780 = vunpack.c.l.b16 %v1645
    %v1781 = vunpack.c.l.b16 %v1646
    %v1782 = vunpack.c.l.b16 %v1647
    %v1783 = vunpack.c.l.b16 %v1648
    %v1784 = vunpack.c.l.b16 %v1649
    %v1785 = vunpack.c.l.b16 %v1650
    %v1786 = vunpack.c.l.b16 %v1651
    %v1787 = vunpack.c.l.b16 %v1652
    %v1788 = vunpack.c.l.b16 %v1653
    %v1789 = vunpack.c.l.b16 %v1654
    %v1790 = vunpack.c.l.b16 %v1655
    %v1791 = vunpack.c.l.b16 %v1656
    %v1792 = vunpack.c.l.b16 %v1657
    %v1793 = vunpack.c.l.b16 %v1658
    %v1794 = vunpack.c.l.b16 %v1659
    %v1795 = vunpack.c.l.b16 %v1660
    %v1796 = vunpack.c.l.b16 %v1661
    %v1797 = vunpack.c.l.b16 %v1662
    %v1798 = vunpack.c.l.b16 %v1663
    %v1799 = vunpack.c.l.b16 %v1664
    %v1800 = vunpack.c.l.b16 %v1665
    %v1801 = vunpack.c.l.b16 %v1666
    %v1802 = vunpack.c.l.b16 %v1667
    %v1803 = vunpack.c.l.b16 %v1668
    %v1804 = vunpack.c.l.b16 %v1669
    %v1805 = vunpack.c.l.b16 %v1670
    %v1806 = vunpack.c.l.b16 %v1671
    %v1807 = vunpack.c.l.b16 %v1672
    %v1808 = vunpack.c.l.b16 %v1673
    %v1809 = vunpack.c.l.b16 %v1674
    %v1810 = vunpack.c.l.b16 %v1675
    %v1811 = vunpack.c.l.b16 %v1676
    %v1812 = vunpack.c.l.b16 %v1677
    %v1813 = vunpack.c.l.b16 %v1678
    %v1814 = vunpack.c.l.b16 %v1679
    %v1815 = vunpack.c.l.b16 %v1680
    %v1816 = vunpack.c.l.b16 %v1681
    %v1817 = vunpack.c.l.b16 %v1682
    %v1818 = vunpack.c.l.b16 %v1683
    %v1819 = vunpack.c.l.b16 %v1684
    %v1820 = vunpack.c.l.b16 %v1685
    %v1821 = vunpack.c.l.b16 %v1686
    %v1822 = vpack.c.b16 %v1759, %v1758
    %v1823 = vpack.c.b16 %v1761, %v1760
    %v1824 = vpack.c.b16 %v1763, %v1762
    %v1825 = vpack.c.b16 %v1765, %v1764
    %v1826 = vpack.c.b16 %v1767, %v1766
    %v1827 = vpack.c.b16 %v1769, %v1768
    %v1828 = vpack.c.b16 %v1771, %v1770
    %v1829 = vpack.c.b16 %v1773, %v1772
    %v1830 = vpack.c.b16 %v1775, %v1774
    %v1831 = vpack.c.b16 %v1777, %v1776
    %v1832 = vpack.c.b16 %v1779, %v1778
    %v1833 = vpack.c.b16 %v1781, %v1780
    %v1834 = vpack.c.b16 %v1783, %v1782
    %v1835 = vpack.c.b16 %v1785, %v1784
    %v1836 = vpack.c.b16 %v1787, %v1786
    %v1837 = vpack.c.b16 %v1789, %v1788
    %v1838 = vpack.c.b16 %v1791, %v1790
    %v1839 = vpack.c.b16 %v1793, %v1792
    %v1840 = vpack.c.b16 %v1795, %v1794
    %v1841 = vpack.c.b16 %v1797, %v1796
    %v1842 = vpack.c.b16 %v1799, %v1798
    %v1843 = vpack.c.b16 %v1801, %v1800
    %v1844 = vpack.c.b16 %v1803, %v1802
    %v1845 = vpack.c.b16 %v1805, %v1804
    %v1846 = vpack.c.b16 %v1807, %v1806
    %v1847 = vpack.c.b16 %v1809, %v1808
    %v1848 = vpack.c.b16 %v1811, %v1810
    %v1849 = vpack.c.b16 %v1813, %v1812
    %v1850 = vpack.c.b16 %v1815, %v1814
    %v1851 = vpack.c.b16 %v1817, %v1816
    %v1852 = vpack.c.b16 %v1819, %v1818
    %v1853 = vpack.c.b16 %v1821, %v1820
    %1886 = vmatprep.subr.bf16.mxu0 0
    %1887 = vmatpush1.bf16.msra.mxu0 %v1822
    %1888 = vmatprep.subr.bf16.mxu0 0
    %1889 = vmatpush1.bf16.msra.mxu0 %v1823
    %1890 = vmatprep.subr.bf16.mxu0 0
    %1891 = vmatpush1.bf16.msra.mxu0 %v1824
    %1892 = vmatprep.subr.bf16.mxu0 0
    %1893 = vmatpush1.bf16.msra.mxu0 %v1825
    %1894 = vmatprep.subr.bf16.mxu0 0
    %1895 = vmatpush1.bf16.msra.mxu0 %v1826
    %1896 = vmatprep.subr.bf16.mxu0 0
    %1897 = vmatpush1.bf16.msra.mxu0 %v1827
    %1898 = vmatprep.subr.bf16.mxu0 0
    %1899 = vmatpush1.bf16.msra.mxu0 %v1828
    %1900 = vmatprep.subr.bf16.mxu0 0
    %1901 = vmatpush1.bf16.msra.mxu0 %v1829
    %1902 = vmatprep.subr.bf16.mxu0 0
    %1903 = vmatpush1.bf16.msra.mxu0 %v1830
    %1904 = vmatprep.subr.bf16.mxu0 0
    %1905 = vmatpush1.bf16.msra.mxu0 %v1831
    %1906 = vmatprep.subr.bf16.mxu0 0
    %1907 = vmatpush1.bf16.msra.mxu0 %v1832
    %1908 = vmatprep.subr.bf16.mxu0 0
    %1909 = vmatpush1.bf16.msra.mxu0 %v1833
    %1910 = vmatprep.subr.bf16.mxu0 0
    %1911 = vmatpush1.bf16.msra.mxu0 %v1834
    %1912 = vmatprep.subr.bf16.mxu0 0
    %1913 = vmatpush1.bf16.msra.mxu0 %v1835
    %1914 = vmatprep.subr.bf16.mxu0 0
    %1915 = vmatpush1.bf16.msra.mxu0 %v1836
    %1916 = vmatprep.subr.bf16.mxu0 0
    %1917 = vmatpush1.bf16.msra.mxu0 %v1837
    %1918 = vmatprep.mubr.bf16.mxu0 %v1620
    %1919 = vmatmul.mubr.bf16.gmra.mrb[0].mxu0 %v1619
    %v1920 = vpop.f32.mrb[0].mxu0
    %v1921 = vadd.f32 %v1692, %v1920
    %v1922 = vpop.f32.mrb[0].mxu0
    %v1923 = vpop.f32.mrb[0].mxu0
    %v1924 = vadd.f32 %v1692, %v1923
    %v1925 = vpop.f32.mrb[0].mxu0
    %1926 = vdwg.mxu0
    %1927 = vmatprep.subr.bf16.mxu0 0
    %1928 = vmatpush1.bf16.msra.mxu0 %v1838
    %1929 = vmatprep.subr.bf16.mxu0 0
    %1930 = vmatpush1.bf16.msra.mxu0 %v1839
    %1931 = vmatprep.subr.bf16.mxu0 0
    %1932 = vmatpush1.bf16.msra.mxu0 %v1840
    %1933 = vmatprep.subr.bf16.mxu0 0
    %1934 = vmatpush1.bf16.msra.mxu0 %v1841
    %1935 = vmatprep.subr.bf16.mxu0 0
    %1936 = vmatpush1.bf16.msra.mxu0 %v1842
    %1937 = vmatprep.subr.bf16.mxu0 0
    %1938 = vmatpush1.bf16.msra.mxu0 %v1843
    %1939 = vmatprep.subr.bf16.mxu0 0
    %1940 = vmatpush1.bf16.msra.mxu0 %v1844
    %1941 = vmatprep.subr.bf16.mxu0 0
    %1942 = vmatpush1.bf16.msra.mxu0 %v1845
    %1943 = vmatprep.subr.bf16.mxu0 0
    %1944 = vmatpush1.bf16.msra.mxu0 %v1846
    %1945 = vmatprep.subr.bf16.mxu0 0
    %1946 = vmatpush1.bf16.msra.mxu0 %v1847
    %1947 = vmatprep.subr.bf16.mxu0 0
    %1948 = vmatpush1.bf16.msra.mxu0 %v1848
    %1949 = vmatprep.subr.bf16.mxu0 0
    %1950 = vmatpush1.bf16.msra.mxu0 %v1849
    %1951 = vmatprep.subr.bf16.mxu0 0
    %1952 = vmatpush1.bf16.msra.mxu0 %v1850
    %1953 = vmatprep.subr.bf16.mxu0 0
    %1954 = vmatpush1.bf16.msra.mxu0 %v1851
    %1955 = vmatprep.subr.bf16.mxu0 0
    %1956 = vmatpush1.bf16.msra.mxu0 %v1852
    %1957 = vmatprep.subr.bf16.mxu0 0
    %1958 = vmatpush1.bf16.msra.mxu0 %v1853
    %1959 = vmatprep.mubr.bf16.mxu0 %v1622
    %1960 = vmatmul.mubr.bf16.gmra.mrb[0].mxu0 %v1621
    %v1961 = vpop.f32.mrb[0].mxu0
    %v1962 = vadd.f32 %v1921, %v1961
    %v1963 = vpop.f32.mrb[0].mxu0
    %v1964 = vpop.f32.mrb[0].mxu0
    %v1965 = vadd.f32 %v1924, %v1964
    %v1966 = vpop.f32.mrb[0].mxu0
    %1967 = vdwg.mxu0
    %1968 = vst [vmem:[#allocation2] sm:$0xff] %v1962
    %1969 = vst [vmem:[#allocation2 + $0x8] sm:$0xff] %v1965
    // Predicated region
    $region22: #{neural_net_forward.1} parent=1 // pred_check
      _
    $region23: #{neural_net_forward.1} parent=1 // pred_check_branch
      %1971 = sbr.rel (0) target = $region25
    $region24: #{neural_net_forward.1} parent=1 // pred_region
      %s1973 = ssub.s32 256, 256
      %1974 = vsyncadd [#allocation3], %s1973
      %s1975 = sshll.u32 [#allocation2], 4
      %s1976 = int_to_ptr.vmem [resolvable:$true] %s1975
      %1981 = dma.vmem_to_hbm [thread:$0]  %s1976, 256, %s5, [#allocation3], 128, 128, 8
    $region25: #{neural_net_forward.1} parent=1 // pred_fallthru
      _
    // Predicated region
    $region26: #{neural_net_forward.1} parent=1 // pred_check
      _
    $region27: #{neural_net_forward.1} parent=1 // pred_check_branch
      %1983 = sbr.rel (0) target = $region29
    $region28: #{neural_net_forward.1} parent=1 // pred_region
      %1984 = dma.done [#allocation3], 256
    $region29: #{neural_net_forward.1} parent=1 // pred_fallthru
      _
    %1985 = vsyncpa [#allocation3], 1

</llo_original>
